<compile_context>
chip_gen: v7x
topology: tpu7x:2x2x1
jax: 0.10.0
libtpu: 0.0.40
codegen_flags: <defaults>
</compile_context>

<pallas_src>
import jax
import jax.numpy as jnp
import numpy as np
from jax.experimental import pallas as pl
from jax.experimental.pallas import tpu as pltpu

EPS = 1e-6


def _round_up(v, m):
    return ((v + m - 1) // m) * m


def _make_kernel(*, L, Lp, K, c_out, cs, Tq):
    """Builds the fused EncoderLayer kernel with static shape params closed over."""
    nqb = Lp // Tq
    f32, bf16 = jnp.float32, jnp.bfloat16

    def ch_norm(v, g, b):
        # LayerNorm over the channel axis; unbiased std (PyTorch Tensor.std).
        mu = jnp.mean(v, axis=0, keepdims=True)
        var = jnp.sum((v - mu) ** 2, axis=0, keepdims=True) * (1.0 / (v.shape[0] - 1))
        inv = pl.reciprocal(jnp.sqrt(var) + EPS, approx=True)   # EUP, frees VALU
        return g * ((v - mu) * inv) + b

    def kernel(x_ref,
               wb_ref, bb_ref,
               g1_ref, be1_ref, g2_ref, be2_ref, g3_ref, be3_ref,
               wqkv_ref, bqkv_ref,
               w1t_ref, bf1_ref, w2t_ref, bf2_ref,
               out_ref,
               xs_ref,    # VMEM scratch: (K*cs, Lp) bf16 stacked conv taps
               ao_ref):   # VMEM scratch: (c_out, Lp) f32 attention output
        # --- broadcast: Conv1d(kernel_size=1) == channel-mixing matmul on MXU.
        x = x_ref[0]                                                 # (c_in, Lp) bf16
        h = jnp.dot(wb_ref[...], x, preferred_element_type=f32) + bb_ref[...]
        x1 = ch_norm(h, g1_ref[...], be1_ref[...])                   # (c_out, Lp) f32

        # --- causal-conv taps as lane shifts (no shift-matrix matmuls); stack
        #     them bf16 into one (K*cs, Lp) slab (cs = 16-row-aligned stride).
        col = jax.lax.broadcasted_iota(jnp.int32, (c_out, Lp), 1)    # hoisted
        zero = jnp.zeros_like(x1)                                    # hoisted
        zpad = jnp.zeros((cs - c_out, Lp), f32) if cs > c_out else None
        for j in range(K):                                           # static unroll
            d = K - 1 - j                                            # tap delay (past)
            tap = x1 if d == 0 else jnp.where(
                col < d, zero, pltpu.roll(x1, shift=d, axis=1))
            if cs > c_out:
                tap = jnp.concatenate([tap, zpad], axis=0)           # full 16-row store
            xs_ref[j * cs:(j + 1) * cs, :] = tap.astype(bf16)

        # --- fused Q/K/V (+ all-ones softmax-denominator row) projection:
        #     one deep-contraction bf16 matmul + one bias add.  The softmax
        #     1/sqrt(c_out) scale is already folded into the Q rows host-side.
        qkv = jnp.dot(wqkv_ref[...], xs_ref[...],
                      preferred_element_type=f32) + bqkv_ref[...]
        q = qkv[:c_out].astype(bf16)
        kk = qkv[c_out:2 * c_out].astype(bf16)
        vex = qkv[2 * c_out:].astype(bf16)        # (c_out+1, Lp); last row == 1.0

        # --- attention: query-block tiled, causal block skipping, deferred
        #     normalization.  Only a (Tq, kv_end) score strip is live at once.
        for qb in range(nqb):                                        # static unroll
            q0 = qb * Tq
            kv_end = q0 + Tq            # keys beyond the query block are masked anyway
            q_s = q[:, q0:q0 + Tq]                                   # (c_out, Tq)
            s = jax.lax.dot_general(                                 # TN dot: no q.T
                q_s, kk[:, :kv_end], (((0,), (0,)), ((), ())),
                preferred_element_type=f32)                          # (Tq, kv_end)
            qpos = q0 + jax.lax.broadcasted_iota(jnp.int32, (Tq, kv_end), 0)
            kpos = jax.lax.broadcasted_iota(jnp.int32, (Tq, kv_end), 1)
            valid = kpos <= qpos
            if kv_end > L:                       # kill padded key columns only where they exist
                valid = valid & (kpos < L)
            s = jnp.where(valid, s, -1e9)
            m = jnp.max(s, axis=-1, keepdims=True)
            # TODO(synk): on v6e/v7x a bf16 exp (bf16 EUP) would halve the
            #             transcendental cost; kept f32 for v5e portability.
            e = jnp.exp(s - m).astype(bf16)                          # (Tq, kv_end)
            pv = jax.lax.dot_general(                                # (c_out+1, Tq)
                vex[:, :kv_end], e, (((1,), (1,)), ((), ())),
                preferred_element_type=f32)
            inv = pl.reciprocal(pv[c_out:c_out + 1], approx=True)    # row-sum recip (1, Tq)
            ao_ref[:, q0:q0 + Tq] = pv[:c_out] * inv                 # deferred softmax norm

        xa = x1 + ao_ref[...]                        # dropout1 == identity (eval)
        x2 = ch_norm(xa, g2_ref[...], be2_ref[...])

        # --- FeedForward directly in NCL layout (weights pre-transposed host-side).
        h1 = jnp.maximum(
            jnp.dot(w1t_ref[...], x2.astype(bf16),
                    preferred_element_type=f32) + bf1_ref[...], 0.0)
        y2 = jnp.dot(w2t_ref[...], h1.astype(bf16),
                     preferred_element_type=f32) + bf2_ref[...]
        xb = xa + y2                                 # dropout2 == identity (eval)

        out_ref[0] = ch_norm(xb, g3_ref[...], be3_ref[...])

    return kernel


def encoder_layer(x, mask, params, *, lane=128, tq=256):
    """x: (B, c_in, L) f32; mask: (L, L) causal mask (nonzero == attend).

    The causal(+padding) mask is regenerated in-kernel; `mask` is accepted only
    for API parity with the PyTorch module (assumed causal).
    """
    del mask  # causal mask generated in-kernel (see TODO in module header)
    B, c_in, L = x.shape
    c_out = params["wb"].shape[0]
    K = params["wq"].shape[0]
    f32, bf16 = jnp.float32, jnp.bfloat16

    Lp = max(lane, _round_up(L, lane))       # lane-dense padded length
    Tq = tq if Lp % tq == 0 else lane        # query-block width (divides Lp)
    cs = _round_up(c_out, 16)                # bf16 sublane-packed per-tap stride

    # Pad length to Lp; padded key columns are killed by the in-kernel mask.
    xp = jnp.pad(x, ((0, 0), (0, 0), (0, Lp - L))).astype(bf16)

    # Fuse K Q-taps, K K-taps, V(1x1) and an all-ones row (softmax denominator)
    # into one (3*c_out+1, K*cs) weight.  Softmax scale folded into Q rows/bias.
    scale = 1.0 / (c_out ** 0.5)

    def tap_flat(w, s=1.0):                  # w: (K, c_out, c_out)
        flat = jnp.zeros((c_out, K * cs), f32)
        for j in range(K):
            flat = flat.at[:, j * cs:j * cs + c_out].set(w[j] * s)
        return flat

    wq_flat = tap_flat(params["wq"], scale)
    wk_flat = tap_flat(params["wk"])
    wv_flat = jnp.zeros((c_out, K * cs), f32).at[
        :, (K - 1) * cs:(K - 1) * cs + c_out].set(params["wv"])   # V sees the d=0 tap
    ones_w = jnp.zeros((1, K * cs), f32)     # zero weight + bias 1.0 -> constant 1 row
    wqkv = jnp.concatenate([wq_flat, wk_flat, wv_flat, ones_w], axis=0).astype(bf16)
    bqkv = jnp.concatenate([params["bq"] * scale, params["bk"], params["bv"],
                            jnp.ones((1, 1), f32)], axis=0)

    ins = [
        xp,
        params["wb"].astype(bf16), params["bb"],
        params["g1"], params["be1"], params["g2"], params["be2"],
        params["g3"], params["be3"],
        wqkv, bqkv,
        params["w1"].T.astype(bf16), params["bf1"].T,   # FFN in NCL layout
        params["w2"].T.astype(bf16), params["bf2"].T,
    ]

    def full_spec(a):
        zeros = (0,) * a.ndim
        return pl.BlockSpec(a.shape, lambda b, z=zeros: z)

    in_specs = [pl.BlockSpec((1, c_in, Lp), lambda b: (b, 0, 0))] + \
               [full_spec(a) for a in ins[1:]]
    out_specs = pl.BlockSpec((1, c_out, Lp), lambda b: (b, 0, 0))

    # VMEM budget: double-buffered x/out, bf16 tap slab, ao scratch, one
    # (Tq, Lp) score strip + exp/mask temporaries, and the small channel slabs.
    # Capped at 64 MiB so the limit is valid on every chip (v7x physical VMEM).
    est = (2 * 2 * c_in * Lp * 2 + 2 * c_out * Lp * 4 * 2
           + K * cs * Lp * 2 + c_out * Lp * 4
           + 4 * Tq * Lp * 4 + 12 * c_out * Lp * 4)
    vmem_limit = int(min(max(2 * est, 16 << 20), 64 << 20))

    kernel = _make_kernel(L=L, Lp=Lp, K=K, c_out=c_out, cs=cs, Tq=Tq)

    out = pl.pallas_call(
        kernel,
        out_shape=jax.ShapeDtypeStruct((B, c_out, Lp), jnp.float32),
        grid_spec=pltpu.PrefetchScalarGridSpec(
            num_scalar_prefetch=0,
            grid=(B,),                 # B=2 -> one grid step per TC on v7x
            in_specs=in_specs,
            out_specs=out_specs,
            scratch_shapes=[pltpu.VMEM((K * cs, Lp), bf16),
                            pltpu.VMEM((c_out, Lp), f32)],
        ),
        compiler_params=pltpu.CompilerParams(
            dimension_semantics=("parallel",),
            vmem_limit_bytes=vmem_limit),
    )(*ins)
    return out[:, :, :L]


def reference_one(x, mask, params):
    """Pure-JAX reference for one batch element, mirroring the kernel's
    bf16-operand / f32-accumulation matmul policy (exact softmax / divides)."""
    f32, bf16 = jnp.float32, jnp.bfloat16

    def mm(a, b):
        return jnp.dot(a.astype(bf16), b.astype(bf16), preferred_element_type=f32)

    def ch_norm(v, g, b):
        mu = jnp.mean(v, axis=0, keepdims=True)
        var = jnp.sum((v - mu) ** 2, axis=0, keepdims=True) / (v.shape[0] - 1)
        return g * (v - mu) / (jnp.sqrt(var) + EPS) + b

    L = x.shape[1]
    K = params["wq"].shape[0]

    def shift(a, d):               # causal shift: out[:, t] = a[:, t - d]
        if d == 0:
            return a
        return jnp.concatenate(
            [jnp.zeros((a.shape[0], d), a.dtype), a[:, :L - d]], axis=1)

    x1 = ch_norm(mm(params["wb"], x) + params["bb"], params["g1"], params["be1"])
    q = sum(mm(params["wq"][j], shift(x1, K - 1 - j)) for j in range(K)) + params["bq"]
    k = sum(mm(params["wk"][j], shift(x1, K - 1 - j)) for j in range(K)) + params["bk"]
    v = mm(params["wv"], x1) + params["bv"]
    scores = mm(q.T, k) / jnp.sqrt(jnp.float32(x1.shape[0]))
    scores = jnp.where(mask == 0, jnp.float32(-1e9), scores)
    attn = jax.nn.softmax(scores, axis=-1)
    xa = x1 + mm(v, attn.T)
    x2 = ch_norm(xa, params["g2"], params["be2"])
    y2 = mm(jnp.maximum(mm(x2.T, params["w1"]) + params["bf1"], 0.0),
            params["w2"]) + params["bf2"]
    xb = xa + y2.T
    return ch_norm(xb, params["g3"], params["be3"])


if __name__ == "__main__":
    B, c_in, c_out, L, K = 2, 4, 8, 16, 5

    key = jax.random.PRNGKey(0)
    ks = jax.random.split(key, 20)
    n = lambda k, s, sc=0.2: sc * jax.random.normal(k, s, dtype=jnp.float32)

    params = {
        "wb": n(ks[0], (c_out, c_in)),          "bb": n(ks[1], (c_out, 1), 0.05),
        "g1": 1.0 + n(ks[2], (c_out, 1), 0.05), "be1": n(ks[3], (c_out, 1), 0.05),
        "g2": 1.0 + n(ks[4], (c_out, 1), 0.05), "be2": n(ks[5], (c_out, 1), 0.05),
        "g3": 1.0 + n(ks[6], (c_out, 1), 0.05), "be3": n(ks[7], (c_out, 1), 0.05),
        "wq": n(ks[8], (K, c_out, c_out)),      "bq": n(ks[9], (c_out, 1), 0.05),
        "wk": n(ks[10], (K, c_out, c_out)),     "bk": n(ks[11], (c_out, 1), 0.05),
        "wv": n(ks[12], (c_out, c_out)),        "bv": n(ks[13], (c_out, 1), 0.05),
        "w1": n(ks[14], (c_out, c_out)),        "bf1": n(ks[15], (1, c_out), 0.05),
        "w2": n(ks[16], (c_out, c_out)),        "bf2": n(ks[17], (1, c_out), 0.05),
    }

    x = jax.random.normal(ks[18], (B, c_in, L), dtype=jnp.float32)
    mask = jnp.tril(jnp.ones((L, L), dtype=jnp.float32))   # causal attention mask

    out = jax.block_until_ready(encoder_layer(x, mask, params))
    ref = jax.vmap(lambda xb: reference_one(xb, mask, params))(x)

    assert out.shape == (B, c_out, L)
    assert bool(jnp.all(jnp.isfinite(out)))
    # Tolerance covers bf16 MXU operands, bf16 exp output / deferred softmax
    # normalization and the EUP approx reciprocals in softmax + channel norm.
    np.testing.assert_allclose(np.asarray(out), np.asarray(ref),
                               rtol=3e-2, atol=3e-2)
    print("KERNEL_OK")
</pallas_src>

<mosaic_0001>
module attributes {stable_mosaic.version = 11 : i64} {
  func.func @kernel(%arg0: i32, %arg1: memref<1x4x128xbf16, #tpu.memory_space<vmem>>, %arg2: memref<8x4xbf16, #tpu.memory_space<vmem>>, %arg3: memref<8x1xf32, #tpu.memory_space<vmem>>, %arg4: memref<8x1xf32, #tpu.memory_space<vmem>>, %arg5: memref<8x1xf32, #tpu.memory_space<vmem>>, %arg6: memref<8x1xf32, #tpu.memory_space<vmem>>, %arg7: memref<8x1xf32, #tpu.memory_space<vmem>>, %arg8: memref<8x1xf32, #tpu.memory_space<vmem>>, %arg9: memref<8x1xf32, #tpu.memory_space<vmem>>, %arg10: memref<25x80xbf16, #tpu.memory_space<vmem>>, %arg11: memref<25x1xf32, #tpu.memory_space<vmem>>, %arg12: memref<8x8xbf16, #tpu.memory_space<vmem>>, %arg13: memref<8x1xf32, #tpu.memory_space<vmem>>, %arg14: memref<8x8xbf16, #tpu.memory_space<vmem>>, %arg15: memref<8x1xf32, #tpu.memory_space<vmem>>, %arg16: memref<1x8x128xf32, #tpu.memory_space<vmem>>, %arg17: memref<80x128xbf16, #tpu.memory_space<vmem>>, %arg18: memref<8x128xf32, #tpu.memory_space<vmem>>) attributes {dimension_semantics = [#tpu.dimension_semantics<parallel>], iteration_bounds = array<i64: 2>, scalar_prefetch = 0 : i64, scratch_operands = 2 : i64, tpu.core_type = #tpu.core_type<tc>, window_params = [{transform_indices = @transform_0, window_bounds = array<i64: 1, 4, 128>}, {pipeline_mode = #tpu.pipeline_mode<synchronous>, transform_indices = @transform_1, window_bounds = array<i64: 8, 4>}, {pipeline_mode = #tpu.pipeline_mode<synchronous>, transform_indices = @transform_2, window_bounds = array<i64: 8, 1>}, {pipeline_mode = #tpu.pipeline_mode<synchronous>, transform_indices = @transform_3, window_bounds = array<i64: 8, 1>}, {pipeline_mode = #tpu.pipeline_mode<synchronous>, transform_indices = @transform_4, window_bounds = array<i64: 8, 1>}, {pipeline_mode = #tpu.pipeline_mode<synchronous>, transform_indices = @transform_5, window_bounds = array<i64: 8, 1>}, {pipeline_mode = #tpu.pipeline_mode<synchronous>, transform_indices = @transform_6, window_bounds = array<i64: 8, 1>}, {pipeline_mode = #tpu.pipeline_mode<synchronous>, transform_indices = @transform_7, window_bounds = array<i64: 8, 1>}, {pipeline_mode = #tpu.pipeline_mode<synchronous>, transform_indices = @transform_8, window_bounds = array<i64: 8, 1>}, {pipeline_mode = #tpu.pipeline_mode<synchronous>, transform_indices = @transform_9, window_bounds = array<i64: 25, 80>}, {pipeline_mode = #tpu.pipeline_mode<synchronous>, transform_indices = @transform_10, window_bounds = array<i64: 25, 1>}, {pipeline_mode = #tpu.pipeline_mode<synchronous>, transform_indices = @transform_11, window_bounds = array<i64: 8, 8>}, {pipeline_mode = #tpu.pipeline_mode<synchronous>, transform_indices = @transform_12, window_bounds = array<i64: 8, 1>}, {pipeline_mode = #tpu.pipeline_mode<synchronous>, transform_indices = @transform_13, window_bounds = array<i64: 8, 8>}, {pipeline_mode = #tpu.pipeline_mode<synchronous>, transform_indices = @transform_14, window_bounds = array<i64: 8, 1>}, {transform_indices = @transform_15, window_bounds = array<i64: 1, 8, 128>}]} {
    %c0 = arith.constant 0 : index
    %c0_0 = arith.constant 0 : index
    %c0_1 = arith.constant 0 : index
    %0 = vector.load %arg1[%c0, %c0_0, %c0_1] : memref<1x4x128xbf16, #tpu.memory_space<vmem>>, vector<1x4x128xbf16>
    %1 = vector.shape_cast %0 : vector<1x4x128xbf16> to vector<4x128xbf16>
    %c0_2 = arith.constant 0 : index
    %c0_3 = arith.constant 0 : index
    %2 = vector.load %arg2[%c0_2, %c0_3] : memref<8x4xbf16, #tpu.memory_space<vmem>>, vector<8x4xbf16>
    %cst = arith.constant dense<0.000000e+00> : vector<8x128xf32>
    %3 = tpu.matmul %2, %1, %cst {dimension_numbers = #tpu.dot_dimension_numbers<[1], [0], [0], [1], [0, 0, 1, 1], [], []>} : vector<8x4xbf16>, vector<4x128xbf16>, vector<8x128xf32> -> vector<8x128xf32>
    %c0_4 = arith.constant 0 : index
    %c0_5 = arith.constant 0 : index
    %4 = vector.load %arg3[%c0_4, %c0_5] : memref<8x1xf32, #tpu.memory_space<vmem>>, vector<8x1xf32>
    %5 = vector.broadcast %4 : vector<8x1xf32> to vector<8x128xf32>
    %6 = arith.addf %3, %5 : vector<8x128xf32>
    %c0_6 = arith.constant 0 : index
    %c0_7 = arith.constant 0 : index
    %7 = vector.load %arg4[%c0_6, %c0_7] : memref<8x1xf32, #tpu.memory_space<vmem>>, vector<8x1xf32>
    %c0_8 = arith.constant 0 : index
    %c0_9 = arith.constant 0 : index
    %8 = vector.load %arg5[%c0_8, %c0_9] : memref<8x1xf32, #tpu.memory_space<vmem>>, vector<8x1xf32>
    %cst_10 = arith.constant dense<0.000000e+00> : vector<128xf32>
    %9 = vector.multi_reduction <add>, %6, %cst_10 [0] : vector<8x128xf32> to vector<128xf32>
    %10 = vector.shape_cast %9 : vector<128xf32> to vector<1x128xf32>
    %cst_11 = arith.constant 8.000000e+00 : f32
    %11 = vector.broadcast %cst_11 : f32 to vector<1x128xf32>
    %12 = arith.divf %10, %11 : vector<1x128xf32>
    %13 = vector.broadcast %12 : vector<1x128xf32> to vector<8x128xf32>
    %14 = arith.subf %6, %13 : vector<8x128xf32>
    %15 = arith.mulf %14, %14 : vector<8x128xf32>
    %cst_12 = arith.constant dense<0.000000e+00> : vector<128xf32>
    %16 = vector.multi_reduction <add>, %15, %cst_12 [0] : vector<8x128xf32> to vector<128xf32>
    %17 = vector.shape_cast %16 : vector<128xf32> to vector<1x128xf32>
    %cst_13 = arith.constant 0.142857149 : f32
    %18 = vector.broadcast %cst_13 : f32 to vector<1x128xf32>
    %19 = arith.mulf %17, %18 : vector<1x128xf32>
    %20 = math.sqrt %19 : vector<1x128xf32>
    %cst_14 = arith.constant 9.99999997E-7 : f32
    %21 = vector.broadcast %cst_14 : f32 to vector<1x128xf32>
    %22 = arith.addf %20, %21 : vector<1x128xf32>
    %23 = tpu.reciprocal %22 {approx = true} : vector<1x128xf32> -> vector<1x128xf32>
    %24 = vector.broadcast %12 : vector<1x128xf32> to vector<8x128xf32>
    %25 = arith.subf %6, %24 : vector<8x128xf32>
    %26 = vector.broadcast %23 : vector<1x128xf32> to vector<8x128xf32>
    %27 = arith.mulf %25, %26 : vector<8x128xf32>
    %28 = vector.broadcast %7 : vector<8x1xf32> to vector<8x128xf32>
    %29 = arith.mulf %28, %27 : vector<8x128xf32>
    %30 = vector.broadcast %8 : vector<8x1xf32> to vector<8x128xf32>
    %31 = arith.addf %29, %30 : vector<8x128xf32>
    %32 = tpu.iota {dimensions = array<i32: 1>} : vector<8x128xi32>
    %cst_15 = arith.constant 0.000000e+00 : f32
    %33 = vector.broadcast %cst_15 : f32 to vector<8x128xf32>
    %cst_16 = arith.constant 0.000000e+00 : f32
    %34 = vector.broadcast %cst_16 : f32 to vector<8x128xf32>
    %c4_i32 = arith.constant 4 : i32
    %35 = vector.broadcast %c4_i32 : i32 to vector<8x128xi32>
    %36 = arith.cmpi slt, %32, %35 : vector<8x128xi32>
    %c4_i32_17 = arith.constant 4 : i32
    %37 = tpu.dynamic_rotate %31 by %c4_i32_17 dim 1 : vector<8x128xf32>, i32 -> vector<8x128xf32>
    %38 = arith.select %36, %33, %37 : vector<8x128xi1>, vector<8x128xf32>
    %39 = tpu.concatenate %38, %34 in 0 : vector<8x128xf32>, vector<8x128xf32> -> vector<16x128xf32>
    %40 = arith.truncf %39 : vector<16x128xf32> to vector<16x128xbf16>
    %c0_18 = arith.constant 0 : index
    %c0_19 = arith.constant 0 : index
    %41 = vector.load %arg17[%c0_18, %c0_19] : memref<80x128xbf16, #tpu.memory_space<vmem>>, vector<16x128xbf16>
    tpu.vector_store %arg17[%c0_18, %c0_19], %40 {strides = array<i32>} : memref<80x128xbf16, #tpu.memory_space<vmem>>, vector<16x128xbf16>,
    %c3_i32 = arith.constant 3 : i32
    %42 = vector.broadcast %c3_i32 : i32 to vector<8x128xi32>
    %43 = arith.cmpi slt, %32, %42 : vector<8x128xi32>
    %c3_i32_20 = arith.constant 3 : i32
    %44 = tpu.dynamic_rotate %31 by %c3_i32_20 dim 1 : vector<8x128xf32>, i32 -> vector<8x128xf32>
    %45 = arith.select %43, %33, %44 : vector<8x128xi1>, vector<8x128xf32>
    %46 = tpu.concatenate %45, %34 in 0 : vector<8x128xf32>, vector<8x128xf32> -> vector<16x128xf32>
    %47 = arith.truncf %46 : vector<16x128xf32> to vector<16x128xbf16>
    %c16 = arith.constant 16 : index
    %c0_21 = arith.constant 0 : index
    %48 = vector.load %arg17[%c16, %c0_21] : memref<80x128xbf16, #tpu.memory_space<vmem>>, vector<16x128xbf16>
    tpu.vector_store %arg17[%c16, %c0_21], %47 {strides = array<i32>} : memref<80x128xbf16, #tpu.memory_space<vmem>>, vector<16x128xbf16>,
    %c2_i32 = arith.constant 2 : i32
    %49 = vector.broadcast %c2_i32 : i32 to vector<8x128xi32>
    %50 = arith.cmpi slt, %32, %49 : vector<8x128xi32>
    %c2_i32_22 = arith.constant 2 : i32
    %51 = tpu.dynamic_rotate %31 by %c2_i32_22 dim 1 : vector<8x128xf32>, i32 -> vector<8x128xf32>
    %52 = arith.select %50, %33, %51 : vector<8x128xi1>, vector<8x128xf32>
    %53 = tpu.concatenate %52, %34 in 0 : vector<8x128xf32>, vector<8x128xf32> -> vector<16x128xf32>
    %54 = arith.truncf %53 : vector<16x128xf32> to vector<16x128xbf16>
    %c32 = arith.constant 32 : index
    %c0_23 = arith.constant 0 : index
    %55 = vector.load %arg17[%c32, %c0_23] : memref<80x128xbf16, #tpu.memory_space<vmem>>, vector<16x128xbf16>
    tpu.vector_store %arg17[%c32, %c0_23], %54 {strides = array<i32>} : memref<80x128xbf16, #tpu.memory_space<vmem>>, vector<16x128xbf16>,
    %c1_i32 = arith.constant 1 : i32
    %56 = vector.broadcast %c1_i32 : i32 to vector<8x128xi32>
    %57 = arith.cmpi slt, %32, %56 : vector<8x128xi32>
    %c1_i32_24 = arith.constant 1 : i32
    %58 = tpu.dynamic_rotate %31 by %c1_i32_24 dim 1 : vector<8x128xf32>, i32 -> vector<8x128xf32>
    %59 = arith.select %57, %33, %58 : vector<8x128xi1>, vector<8x128xf32>
    %60 = tpu.concatenate %59, %34 in 0 : vector<8x128xf32>, vector<8x128xf32> -> vector<16x128xf32>
    %61 = arith.truncf %60 : vector<16x128xf32> to vector<16x128xbf16>
    %c48 = arith.constant 48 : index
    %c0_25 = arith.constant 0 : index
    %62 = vector.load %arg17[%c48, %c0_25] : memref<80x128xbf16, #tpu.memory_space<vmem>>, vector<16x128xbf16>
    tpu.vector_store %arg17[%c48, %c0_25], %61 {strides = array<i32>} : memref<80x128xbf16, #tpu.memory_space<vmem>>, vector<16x128xbf16>,
    %63 = tpu.concatenate %31, %34 in 0 : vector<8x128xf32>, vector<8x128xf32> -> vector<16x128xf32>
    %64 = arith.truncf %63 : vector<16x128xf32> to vector<16x128xbf16>
    %c64 = arith.constant 64 : index
    %c0_26 = arith.constant 0 : index
    %65 = vector.load %arg17[%c64, %c0_26] : memref<80x128xbf16, #tpu.memory_space<vmem>>, vector<16x128xbf16>
    tpu.vector_store %arg17[%c64, %c0_26], %64 {strides = array<i32>} : memref<80x128xbf16, #tpu.memory_space<vmem>>, vector<16x128xbf16>,
    %c0_27 = arith.constant 0 : index
    %c0_28 = arith.constant 0 : index
    %66 = vector.load %arg10[%c0_27, %c0_28] : memref<25x80xbf16, #tpu.memory_space<vmem>>, vector<25x80xbf16>
    %c0_29 = arith.constant 0 : index
    %c0_30 = arith.constant 0 : index
    %67 = vector.load %arg17[%c0_29, %c0_30] : memref<80x128xbf16, #tpu.memory_space<vmem>>, vector<80x128xbf16>
    %cst_31 = arith.constant dense<0.000000e+00> : vector<25x128xf32>
    %68 = tpu.matmul %66, %67, %cst_31 {dimension_numbers = #tpu.dot_dimension_numbers<[1], [0], [0], [1], [0, 0, 1, 1], [], []>} : vector<25x80xbf16>, vector<80x128xbf16>, vector<25x128xf32> -> vector<25x128xf32>
    %c0_32 = arith.constant 0 : index
    %c0_33 = arith.constant 0 : index
    %69 = vector.load %arg11[%c0_32, %c0_33] : memref<25x1xf32, #tpu.memory_space<vmem>>, vector<25x1xf32>
    %70 = vector.broadcast %69 : vector<25x1xf32> to vector<25x128xf32>
    %71 = arith.addf %68, %70 : vector<25x128xf32>
    %72 = vector.extract_strided_slice %71 {offsets = [0, 0], sizes = [8, 128], strides = [1, 1]} : vector<25x128xf32> to vector<8x128xf32>
    %73 = arith.truncf %72 : vector<8x128xf32> to vector<8x128xbf16>
    %74 = vector.extract_strided_slice %71 {offsets = [8, 0], sizes = [8, 128], strides = [1, 1]} : vector<25x128xf32> to vector<8x128xf32>
    %75 = arith.truncf %74 : vector<8x128xf32> to vector<8x128xbf16>
    %76 = vector.extract_strided_slice %71 {offsets = [16, 0], sizes = [9, 128], strides = [1, 1]} : vector<25x128xf32> to vector<9x128xf32>
    %77 = arith.truncf %76 : vector<9x128xf32> to vector<9x128xbf16>
    %cst_34 = arith.constant dense<0.000000e+00> : vector<128x128xf32>
    %78 = tpu.matmul %73, %75, %cst_34 {dimension_numbers = #tpu.dot_dimension_numbers<[0], [0], [1], [1], [0, 1, 1, 1], [], []>} : vector<8x128xbf16>, vector<8x128xbf16>, vector<128x128xf32> -> vector<128x128xf32>
    %79 = tpu.iota {dimensions = array<i32: 0>} : vector<128x128xi32>
    %c0_i32 = arith.constant 0 : i32
    %80 = vector.broadcast %c0_i32 : i32 to vector<128x128xi32>
    %81 = arith.addi %80, %79 : vector<128x128xi32>
    %82 = tpu.iota {dimensions = array<i32: 1>} : vector<128x128xi32>
    %83 = arith.cmpi sle, %82, %81 : vector<128x128xi32>
    %c16_i32 = arith.constant 16 : i32
    %84 = vector.broadcast %c16_i32 : i32 to vector<128x128xi32>
    %85 = arith.cmpi slt, %82, %84 : vector<128x128xi32>
    %86 = arith.andi %83, %85 : vector<128x128xi1>
    %cst_35 = arith.constant -1.000000e+09 : f32
    %87 = vector.broadcast %cst_35 : f32 to vector<128x128xf32>
    %88 = arith.select %86, %78, %87 : vector<128x128xi1>, vector<128x128xf32>
    %cst_36 = arith.constant dense<0xFF800000> : vector<128xf32>
    %89 = vector.multi_reduction <maximumf>, %88, %cst_36 [1] : vector<128x128xf32> to vector<128xf32>
    %90 = vector.shape_cast %89 : vector<128xf32> to vector<128x1xf32>
    %91 = vector.broadcast %90 : vector<128x1xf32> to vector<128x128xf32>
    %92 = arith.subf %88, %91 : vector<128x128xf32>
    %93 = math.exp %92 : vector<128x128xf32>
    %94 = arith.truncf %93 : vector<128x128xf32> to vector<128x128xbf16>
    %cst_37 = arith.constant dense<0.000000e+00> : vector<9x128xf32>
    %95 = tpu.matmul %77, %94, %cst_37 {dimension_numbers = #tpu.dot_dimension_numbers<[1], [1], [0], [0], [0, 0, 1, 0], [], []>} : vector<9x128xbf16>, vector<128x128xbf16>, vector<9x128xf32> -> vector<9x128xf32>
    %96 = vector.extract_strided_slice %95 {offsets = [8, 0], sizes = [1, 128], strides = [1, 1]} : vector<9x128xf32> to vector<1x128xf32>
    %97 = tpu.reciprocal %96 {approx = true} : vector<1x128xf32> -> vector<1x128xf32>
    %98 = vector.extract_strided_slice %95 {offsets = [0, 0], sizes = [8, 128], strides = [1, 1]} : vector<9x128xf32> to vector<8x128xf32>
    %99 = vector.broadcast %97 : vector<1x128xf32> to vector<8x128xf32>
    %100 = arith.mulf %98, %99 : vector<8x128xf32>
    %c0_38 = arith.constant 0 : index
    %c0_39 = arith.constant 0 : index
    %101 = vector.load %arg18[%c0_38, %c0_39] : memref<8x128xf32, #tpu.memory_space<vmem>>, vector<8x128xf32>
    tpu.vector_store %arg18[%c0_38, %c0_39], %100 {strides = array<i32>} : memref<8x128xf32, #tpu.memory_space<vmem>>, vector<8x128xf32>,
    %c0_40 = arith.constant 0 : index
    %c0_41 = arith.constant 0 : index
    %102 = vector.load %arg18[%c0_40, %c0_41] : memref<8x128xf32, #tpu.memory_space<vmem>>, vector<8x128xf32>
    %103 = arith.addf %31, %102 : vector<8x128xf32>
    %c0_42 = arith.constant 0 : index
    %c0_43 = arith.constant 0 : index
    %104 = vector.load %arg6[%c0_42, %c0_43] : memref<8x1xf32, #tpu.memory_space<vmem>>, vector<8x1xf32>
    %c0_44 = arith.constant 0 : index
    %c0_45 = arith.constant 0 : index
    %105 = vector.load %arg7[%c0_44, %c0_45] : memref<8x1xf32, #tpu.memory_space<vmem>>, vector<8x1xf32>
    %cst_46 = arith.constant dense<0.000000e+00> : vector<128xf32>
    %106 = vector.multi_reduction <add>, %103, %cst_46 [0] : vector<8x128xf32> to vector<128xf32>
    %107 = vector.shape_cast %106 : vector<128xf32> to vector<1x128xf32>
    %cst_47 = arith.constant 8.000000e+00 : f32
    %108 = vector.broadcast %cst_47 : f32 to vector<1x128xf32>
    %109 = arith.divf %107, %108 : vector<1x128xf32>
    %110 = vector.broadcast %109 : vector<1x128xf32> to vector<8x128xf32>
    %111 = arith.subf %103, %110 : vector<8x128xf32>
    %112 = arith.mulf %111, %111 : vector<8x128xf32>
    %cst_48 = arith.constant dense<0.000000e+00> : vector<128xf32>
    %113 = vector.multi_reduction <add>, %112, %cst_48 [0] : vector<8x128xf32> to vector<128xf32>
    %114 = vector.shape_cast %113 : vector<128xf32> to vector<1x128xf32>
    %cst_49 = arith.constant 0.142857149 : f32
    %115 = vector.broadcast %cst_49 : f32 to vector<1x128xf32>
    %116 = arith.mulf %114, %115 : vector<1x128xf32>
    %117 = math.sqrt %116 : vector<1x128xf32>
    %cst_50 = arith.constant 9.99999997E-7 : f32
    %118 = vector.broadcast %cst_50 : f32 to vector<1x128xf32>
    %119 = arith.addf %117, %118 : vector<1x128xf32>
    %120 = tpu.reciprocal %119 {approx = true} : vector<1x128xf32> -> vector<1x128xf32>
    %121 = vector.broadcast %109 : vector<1x128xf32> to vector<8x128xf32>
    %122 = arith.subf %103, %121 : vector<8x128xf32>
    %123 = vector.broadcast %120 : vector<1x128xf32> to vector<8x128xf32>
    %124 = arith.mulf %122, %123 : vector<8x128xf32>
    %125 = vector.broadcast %104 : vector<8x1xf32> to vector<8x128xf32>
    %126 = arith.mulf %125, %124 : vector<8x128xf32>
    %127 = vector.broadcast %105 : vector<8x1xf32> to vector<8x128xf32>
    %128 = arith.addf %126, %127 : vector<8x128xf32>
    %c0_51 = arith.constant 0 : index
    %c0_52 = arith.constant 0 : index
    %129 = vector.load %arg12[%c0_51, %c0_52] : memref<8x8xbf16, #tpu.memory_space<vmem>>, vector<8x8xbf16>
    %130 = arith.truncf %128 : vector<8x128xf32> to vector<8x128xbf16>
    %cst_53 = arith.constant dense<0.000000e+00> : vector<8x128xf32>
    %131 = tpu.matmul %129, %130, %cst_53 {dimension_numbers = #tpu.dot_dimension_numbers<[1], [0], [0], [1], [0, 0, 1, 1], [], []>} : vector<8x8xbf16>, vector<8x128xbf16>, vector<8x128xf32> -> vector<8x128xf32>
    %c0_54 = arith.constant 0 : index
    %c0_55 = arith.constant 0 : index
    %132 = vector.load %arg13[%c0_54, %c0_55] : memref<8x1xf32, #tpu.memory_space<vmem>>, vector<8x1xf32>
    %133 = vector.broadcast %132 : vector<8x1xf32> to vector<8x128xf32>
    %134 = arith.addf %131, %133 : vector<8x128xf32>
    %cst_56 = arith.constant 0.000000e+00 : f32
    %135 = vector.broadcast %cst_56 : f32 to vector<8x128xf32>
    %136 = arith.maximumf %134, %135 : vector<8x128xf32>
    %c0_57 = arith.constant 0 : index
    %c0_58 = arith.constant 0 : index
    %137 = vector.load %arg14[%c0_57, %c0_58] : memref<8x8xbf16, #tpu.memory_space<vmem>>, vector<8x8xbf16>
    %138 = arith.truncf %136 : vector<8x128xf32> to vector<8x128xbf16>
    %cst_59 = arith.constant dense<0.000000e+00> : vector<8x128xf32>
    %139 = tpu.matmul %137, %138, %cst_59 {dimension_numbers = #tpu.dot_dimension_numbers<[1], [0], [0], [1], [0, 0, 1, 1], [], []>} : vector<8x8xbf16>, vector<8x128xbf16>, vector<8x128xf32> -> vector<8x128xf32>
    %c0_60 = arith.constant 0 : index
    %c0_61 = arith.constant 0 : index
    %140 = vector.load %arg15[%c0_60, %c0_61] : memref<8x1xf32, #tpu.memory_space<vmem>>, vector<8x1xf32>
    %141 = vector.broadcast %140 : vector<8x1xf32> to vector<8x128xf32>
    %142 = arith.addf %139, %141 : vector<8x128xf32>
    %143 = arith.addf %103, %142 : vector<8x128xf32>
    %c0_62 = arith.constant 0 : index
    %c0_63 = arith.constant 0 : index
    %144 = vector.load %arg8[%c0_62, %c0_63] : memref<8x1xf32, #tpu.memory_space<vmem>>, vector<8x1xf32>
    %c0_64 = arith.constant 0 : index
    %c0_65 = arith.constant 0 : index
    %145 = vector.load %arg9[%c0_64, %c0_65] : memref<8x1xf32, #tpu.memory_space<vmem>>, vector<8x1xf32>
    %cst_66 = arith.constant dense<0.000000e+00> : vector<128xf32>
    %146 = vector.multi_reduction <add>, %143, %cst_66 [0] : vector<8x128xf32> to vector<128xf32>
    %147 = vector.shape_cast %146 : vector<128xf32> to vector<1x128xf32>
    %cst_67 = arith.constant 8.000000e+00 : f32
    %148 = vector.broadcast %cst_67 : f32 to vector<1x128xf32>
    %149 = arith.divf %147, %148 : vector<1x128xf32>
    %150 = vector.broadcast %149 : vector<1x128xf32> to vector<8x128xf32>
    %151 = arith.subf %143, %150 : vector<8x128xf32>
    %152 = arith.mulf %151, %151 : vector<8x128xf32>
    %cst_68 = arith.constant dense<0.000000e+00> : vector<128xf32>
    %153 = vector.multi_reduction <add>, %152, %cst_68 [0] : vector<8x128xf32> to vector<128xf32>
    %154 = vector.shape_cast %153 : vector<128xf32> to vector<1x128xf32>
    %cst_69 = arith.constant 0.142857149 : f32
    %155 = vector.broadcast %cst_69 : f32 to vector<1x128xf32>
    %156 = arith.mulf %154, %155 : vector<1x128xf32>
    %157 = math.sqrt %156 : vector<1x128xf32>
    %cst_70 = arith.constant 9.99999997E-7 : f32
    %158 = vector.broadcast %cst_70 : f32 to vector<1x128xf32>
    %159 = arith.addf %157, %158 : vector<1x128xf32>
    %160 = tpu.reciprocal %159 {approx = true} : vector<1x128xf32> -> vector<1x128xf32>
    %161 = vector.broadcast %149 : vector<1x128xf32> to vector<8x128xf32>
    %162 = arith.subf %143, %161 : vector<8x128xf32>
    %163 = vector.broadcast %160 : vector<1x128xf32> to vector<8x128xf32>
    %164 = arith.mulf %162, %163 : vector<8x128xf32>
    %165 = vector.broadcast %144 : vector<8x1xf32> to vector<8x128xf32>
    %166 = arith.mulf %165, %164 : vector<8x128xf32>
    %167 = vector.broadcast %145 : vector<8x1xf32> to vector<8x128xf32>
    %168 = arith.addf %166, %167 : vector<8x128xf32>
    %c0_71 = arith.constant 0 : index
    %c0_72 = arith.constant 0 : index
    %c0_73 = arith.constant 0 : index
    %169 = vector.load %arg16[%c0_71, %c0_72, %c0_73] : memref<1x8x128xf32, #tpu.memory_space<vmem>>, vector<1x8x128xf32>
    %170 = vector.shape_cast %169 : vector<1x8x128xf32> to vector<8x128xf32>
    %171 = vector.shape_cast %168 : vector<8x128xf32> to vector<1x8x128xf32>
    tpu.vector_store %arg16[%c0_71, %c0_72, %c0_73], %171 {strides = array<i32>} : memref<1x8x128xf32, #tpu.memory_space<vmem>>, vector<1x8x128xf32>,
    return
  }
  func.func @transform_0(%arg0: i32) -> (i32, i32, i32) {
    %c0_i32 = arith.constant 0 : i32
    %c0_i32_0 = arith.constant 0 : i32
    %c0_i32_1 = arith.constant 0 : i32
    return %arg0, %c0_i32, %c0_i32_0 : i32, i32, i32
  }
  func.func @transform_1(%arg0: i32) -> (i32, i32) {
    %c0_i32 = arith.constant 0 : i32
    %c0_i32_0 = arith.constant 0 : i32
    %c0_i32_1 = arith.constant 0 : i32
    return %c0_i32, %c0_i32_0 : i32, i32
  }
  func.func @transform_2(%arg0: i32) -> (i32, i32) {
    %c0_i32 = arith.constant 0 : i32
    %c0_i32_0 = arith.constant 0 : i32
    %c0_i32_1 = arith.constant 0 : i32
    return %c0_i32, %c0_i32_0 : i32, i32
  }
  func.func @transform_3(%arg0: i32) -> (i32, i32) {
    %c0_i32 = arith.constant 0 : i32
    %c0_i32_0 = arith.constant 0 : i32
    %c0_i32_1 = arith.constant 0 : i32
    return %c0_i32, %c0_i32_0 : i32, i32
  }
  func.func @transform_4(%arg0: i32) -> (i32, i32) {
    %c0_i32 = arith.constant 0 : i32
    %c0_i32_0 = arith.constant 0 : i32
    %c0_i32_1 = arith.constant 0 : i32
    return %c0_i32, %c0_i32_0 : i32, i32
  }
  func.func @transform_5(%arg0: i32) -> (i32, i32) {
    %c0_i32 = arith.constant 0 : i32
    %c0_i32_0 = arith.constant 0 : i32
    %c0_i32_1 = arith.constant 0 : i32
    return %c0_i32, %c0_i32_0 : i32, i32
  }
  func.func @transform_6(%arg0: i32) -> (i32, i32) {
    %c0_i32 = arith.constant 0 : i32
    %c0_i32_0 = arith.constant 0 : i32
    %c0_i32_1 = arith.constant 0 : i32
    return %c0_i32, %c0_i32_0 : i32, i32
  }
  func.func @transform_7(%arg0: i32) -> (i32, i32) {
    %c0_i32 = arith.constant 0 : i32
    %c0_i32_0 = arith.constant 0 : i32
    %c0_i32_1 = arith.constant 0 : i32
    return %c0_i32, %c0_i32_0 : i32, i32
  }
  func.func @transform_8(%arg0: i32) -> (i32, i32) {
    %c0_i32 = arith.constant 0 : i32
    %c0_i32_0 = arith.constant 0 : i32
    %c0_i32_1 = arith.constant 0 : i32
    return %c0_i32, %c0_i32_0 : i32, i32
  }
  func.func @transform_9(%arg0: i32) -> (i32, i32) {
    %c0_i32 = arith.constant 0 : i32
    %c0_i32_0 = arith.constant 0 : i32
    %c0_i32_1 = arith.constant 0 : i32
    return %c0_i32, %c0_i32_0 : i32, i32
  }
  func.func @transform_10(%arg0: i32) -> (i32, i32) {
    %c0_i32 = arith.constant 0 : i32
    %c0_i32_0 = arith.constant 0 : i32
    %c0_i32_1 = arith.constant 0 : i32
    return %c0_i32, %c0_i32_0 : i32, i32
  }
  func.func @transform_11(%arg0: i32) -> (i32, i32) {
    %c0_i32 = arith.constant 0 : i32
    %c0_i32_0 = arith.constant 0 : i32
    %c0_i32_1 = arith.constant 0 : i32
    return %c0_i32, %c0_i32_0 : i32, i32
  }
  func.func @transform_12(%arg0: i32) -> (i32, i32) {
    %c0_i32 = arith.constant 0 : i32
    %c0_i32_0 = arith.constant 0 : i32
    %c0_i32_1 = arith.constant 0 : i32
    return %c0_i32, %c0_i32_0 : i32, i32
  }
  func.func @transform_13(%arg0: i32) -> (i32, i32) {
    %c0_i32 = arith.constant 0 : i32
    %c0_i32_0 = arith.constant 0 : i32
    %c0_i32_1 = arith.constant 0 : i32
    return %c0_i32, %c0_i32_0 : i32, i32
  }
  func.func @transform_14(%arg0: i32) -> (i32, i32) {
    %c0_i32 = arith.constant 0 : i32
    %c0_i32_0 = arith.constant 0 : i32
    %c0_i32_1 = arith.constant 0 : i32
    return %c0_i32, %c0_i32_0 : i32, i32
  }
  func.func @transform_15(%arg0: i32) -> (i32, i32, i32) {
    %c0_i32 = arith.constant 0 : i32
    %c0_i32_0 = arith.constant 0 : i32
    %c0_i32_1 = arith.constant 0 : i32
    return %arg0, %c0_i32, %c0_i32_0 : i32, i32, i32
  }
}

</mosaic_0001>

<llo_original>
// kernel: tpu_custom_call.1
$region0: #{tpu_custom_call.1}
  #allocation0 [shape = 'u32[]', space=smem, size = 0x4, offset = 0x4, fixed_abs, tag = 'smem constant byte address 0x4 - core index']
  #allocation1 [shape = 'u32[144,128]{1,0:T(1,128)}', space=vmem, size = 0x12000, scoped, tag = 'internal scratch']
  #allocation2 [shape = 'bf16[80,128]{1,0:T(16,128)(2,1)}', space=vmem, size = 0x5000, scoped, tag = 'scratch operand']
  #allocation3 [shape = 'f32[8,128]{1,0:T(8,128)}', space=vmem, size = 0x1000, scoped, tag = 'scratch operand']
  %s0 = inlined_call_operand.vmem [shape: bf16[2,4,128], index: 0, kind: input, shape index: {}]
  %s1 = inlined_call_operand.vmem [shape: bf16[8,4], index: 1, kind: input, shape index: {}]
  %s2 = inlined_call_operand.vmem [shape: f32[8,1], index: 2, kind: input, shape index: {}]
  %s3 = inlined_call_operand.vmem [shape: f32[8,1], index: 3, kind: input, shape index: {}]
  %s4 = inlined_call_operand.vmem [shape: f32[8,1], index: 4, kind: input, shape index: {}]
  %s5 = inlined_call_operand.vmem [shape: f32[8,1], index: 5, kind: input, shape index: {}]
  %s6 = inlined_call_operand.vmem [shape: f32[8,1], index: 6, kind: input, shape index: {}]
  %s7 = inlined_call_operand.vmem [shape: f32[8,1], index: 7, kind: input, shape index: {}]
  %s8 = inlined_call_operand.vmem [shape: f32[8,1], index: 8, kind: input, shape index: {}]
  %s9 = inlined_call_operand.vmem [shape: bf16[25,80], index: 9, kind: input, shape index: {}]
  %s10 = inlined_call_operand.vmem [shape: f32[25,1], index: 10, kind: input, shape index: {}]
  %s11 = inlined_call_operand.vmem [shape: bf16[8,8], index: 11, kind: input, shape index: {}]
  %s12 = inlined_call_operand.vmem [shape: f32[8,1], index: 12, kind: input, shape index: {}]
  %s13 = inlined_call_operand.vmem [shape: bf16[8,8], index: 13, kind: input, shape index: {}]
  %s14 = inlined_call_operand.vmem [shape: f32[8,1], index: 14, kind: input, shape index: {}]
  %s15 = inlined_call_operand.hbm [shape: f32[2,8,128], index: 15, kind: output, shape index: {}]
  %s16 = sld [smem:[#allocation0]]
  $region93: #{tpu_custom_call.1} parent=0
    _
  %s18 = ssub.s32 1, %s16
  %s19 = scalar_select 0, %s18, %s16
  $region1: #{tpu_custom_call.1} parent=0
    #allocation4 [shape = 'u8[8192]{0}', space=vmem, size = 0x2000, scoped, tag = 'output window, operand 0']
    #allocation5 [shape = 's32[2]{0}', space=sflag, size = 0x8, scoped, tag = 'scoped memory for tpu_custom_call.1']
    %20 = vsyncpa [#allocation5], 0
    %s21 = scalar_lea.sflag [#allocation5], 1
    %22 = vsyncpa %s21, 0
    loop: start=0, step=1, limit=4
    $region2: #{tpu_custom_call.1} parent=1 // loop_pre_header
      _
    $region3: #{tpu_custom_call.1} parent=1 // loop_header
      %s24 = sphi 0, %s28
      %p25 = scmp.ge.s32.totalorder %s24, 4
      %s34 = sphi 0, %s36
      %s37 = sphi 0, %s34
      %s38 = sphi 0, %s37
      %s54 = sphi 0, %s38
      %s58 = sphi 0, %s58
      %s60 = sphi 0, %s58
      %s61 = sphi 0, %s60
      %s75 = sphi 0, %s61
      %s79 = sphi 0, %s79
      %s81 = sphi 0, %s79
      %s82 = sphi 0, %s81
      %s96 = sphi 0, %s82
      %s100 = sphi 0, %s100
      %s102 = sphi 0, %s100
      %s103 = sphi 0, %s102
      %s117 = sphi 0, %s103
      %s121 = sphi 0, %s121
      %s123 = sphi 0, %s121
      %s124 = sphi 0, %s123
      %s138 = sphi 0, %s124
      %s142 = sphi 0, %s142
      %s144 = sphi 0, %s142
      %s145 = sphi 0, %s144
      %s159 = sphi 0, %s145
      %s163 = sphi 0, %s163
      %s165 = sphi 0, %s163
      %s166 = sphi 0, %s165
      %s180 = sphi 0, %s166
      %s184 = sphi 0, %s184
      %s186 = sphi 0, %s184
      %s187 = sphi 0, %s186
      %s201 = sphi 0, %s187
      %s205 = sphi 0, %s205
      %s207 = sphi 0, %s205
      %s208 = sphi 0, %s207
      %s222 = sphi 0, %s208
      %s226 = sphi 0, %s226
      %s228 = sphi 0, %s226
      %s229 = sphi 0, %s228
      %s243 = sphi 0, %s229
      %s247 = sphi 0, %s247
      %s249 = sphi 0, %s247
      %s250 = sphi 0, %s249
      %s264 = sphi 0, %s250
      %s268 = sphi 0, %s268
      %s270 = sphi 0, %s268
      %s271 = sphi 0, %s270
      %s285 = sphi 0, %s271
      %s289 = sphi 0, %s289
      %s291 = sphi 0, %s289
      %s292 = sphi 0, %s291
      %s306 = sphi 0, %s292
      %s310 = sphi 0, %s310
      %s312 = sphi 0, %s310
      %s313 = sphi 0, %s312
      %s327 = sphi 0, %s313
      %s331 = sphi 0, %s331
      %s333 = sphi 0, %s331
      %s334 = sphi 0, %s333
      %s348 = sphi 0, %s334
      %s354 = sphi 0, %s356
      %s357 = sphi 0, %s354
      %s358 = sphi 0, %s357
      %s374 = sphi 0, %s358
    $region4: #{tpu_custom_call.1} parent=1 // loop_header_branch
      %27 = sbr.rel (%p25) target = $region8
    $region5: #{tpu_custom_call.1} parent=1 // loop_body
      %s29 = ssub.s32 %s24, 1
      %s30 = ssub.s32 %s24, 2
      %s31 = sadd.s32 %s24, 1
      %s32 = ssub.s32 %s24, %s31
      %p33 = scmp.eq.s32.totalorder %s32, 0
      %s35 = sadd.s32 %s34, 1
      %s36 = scalar_select %p33, %s34, %s35
      %p39 = pneg %p33
      %p40 = scmp.eq.s32.totalorder %s24, 1
      %p41 = por %p39, %p40
      %p42 = scmp.ne.s32.totalorder %s34, %s37
      %p43 = scmp.eq.s32.totalorder %s24, 0
      %p44 = por %p42, %p43
      %p45 = scmp.ne.s32.totalorder %s34, %s37
      %p46 = scmp.eq.s32.totalorder %s29, 1
      %p47 = por %p45, %p46
      %p48 = scmp.ne.s32.totalorder %s37, %s38
      %p49 = scmp.eq.s32.totalorder %s29, 0
      %p50 = por %p48, %p49
      %p51 = scmp.ne.s32.totalorder %s37, %s38
      %p52 = scmp.eq.s32.totalorder %s30, 1
      %p53 = por %p51, %p52
      %p55 = scmp.ne.s32.totalorder %s38, %s54
      %p56 = scmp.eq.s32.totalorder %s30, 0
      %p57 = por %p55, %p56
      %s59 = sadd.s32 %s58, 1
      %p62 = scmp.eq.s32.totalorder %s24, 1
      %p63 = scmp.ne.s32.totalorder %s58, %s60
      %p64 = scmp.eq.s32.totalorder %s24, 0
      %p65 = por %p63, %p64
      %p66 = scmp.ne.s32.totalorder %s58, %s60
      %p67 = scmp.eq.s32.totalorder %s29, 1
      %p68 = por %p66, %p67
      %p69 = scmp.ne.s32.totalorder %s60, %s61
      %p70 = scmp.eq.s32.totalorder %s29, 0
      %p71 = por %p69, %p70
      %p72 = scmp.ne.s32.totalorder %s60, %s61
      %p73 = scmp.eq.s32.totalorder %s30, 1
      %p74 = por %p72, %p73
      %p76 = scmp.ne.s32.totalorder %s61, %s75
      %p77 = scmp.eq.s32.totalorder %s30, 0
      %p78 = por %p76, %p77
      %s80 = sadd.s32 %s79, 1
      %p83 = scmp.eq.s32.totalorder %s24, 1
      %p84 = scmp.ne.s32.totalorder %s79, %s81
      %p85 = scmp.eq.s32.totalorder %s24, 0
      %p86 = por %p84, %p85
      %p87 = scmp.ne.s32.totalorder %s79, %s81
      %p88 = scmp.eq.s32.totalorder %s29, 1
      %p89 = por %p87, %p88
      %p90 = scmp.ne.s32.totalorder %s81, %s82
      %p91 = scmp.eq.s32.totalorder %s29, 0
      %p92 = por %p90, %p91
      %p93 = scmp.ne.s32.totalorder %s81, %s82
      %p94 = scmp.eq.s32.totalorder %s30, 1
      %p95 = por %p93, %p94
      %p97 = scmp.ne.s32.totalorder %s82, %s96
      %p98 = scmp.eq.s32.totalorder %s30, 0
      %p99 = por %p97, %p98
      %s101 = sadd.s32 %s100, 1
      %p104 = scmp.eq.s32.totalorder %s24, 1
      %p105 = scmp.ne.s32.totalorder %s100, %s102
      %p106 = scmp.eq.s32.totalorder %s24, 0
      %p107 = por %p105, %p106
      %p108 = scmp.ne.s32.totalorder %s100, %s102
      %p109 = scmp.eq.s32.totalorder %s29, 1
      %p110 = por %p108, %p109
      %p111 = scmp.ne.s32.totalorder %s102, %s103
      %p112 = scmp.eq.s32.totalorder %s29, 0
      %p113 = por %p111, %p112
      %p114 = scmp.ne.s32.totalorder %s102, %s103
      %p115 = scmp.eq.s32.totalorder %s30, 1
      %p116 = por %p114, %p115
      %p118 = scmp.ne.s32.totalorder %s103, %s117
      %p119 = scmp.eq.s32.totalorder %s30, 0
      %p120 = por %p118, %p119
      %s122 = sadd.s32 %s121, 1
      %p125 = scmp.eq.s32.totalorder %s24, 1
      %p126 = scmp.ne.s32.totalorder %s121, %s123
      %p127 = scmp.eq.s32.totalorder %s24, 0
      %p128 = por %p126, %p127
      %p129 = scmp.ne.s32.totalorder %s121, %s123
      %p130 = scmp.eq.s32.totalorder %s29, 1
      %p131 = por %p129, %p130
      %p132 = scmp.ne.s32.totalorder %s123, %s124
      %p133 = scmp.eq.s32.totalorder %s29, 0
      %p134 = por %p132, %p133
      %p135 = scmp.ne.s32.totalorder %s123, %s124
      %p136 = scmp.eq.s32.totalorder %s30, 1
      %p137 = por %p135, %p136
      %p139 = scmp.ne.s32.totalorder %s124, %s138
      %p140 = scmp.eq.s32.totalorder %s30, 0
      %p141 = por %p139, %p140
      %s143 = sadd.s32 %s142, 1
      %p146 = scmp.eq.s32.totalorder %s24, 1
      %p147 = scmp.ne.s32.totalorder %s142, %s144
      %p148 = scmp.eq.s32.totalorder %s24, 0
      %p149 = por %p147, %p148
      %p150 = scmp.ne.s32.totalorder %s142, %s144
      %p151 = scmp.eq.s32.totalorder %s29, 1
      %p152 = por %p150, %p151
      %p153 = scmp.ne.s32.totalorder %s144, %s145
      %p154 = scmp.eq.s32.totalorder %s29, 0
      %p155 = por %p153, %p154
      %p156 = scmp.ne.s32.totalorder %s144, %s145
      %p157 = scmp.eq.s32.totalorder %s30, 1
      %p158 = por %p156, %p157
      %p160 = scmp.ne.s32.totalorder %s145, %s159
      %p161 = scmp.eq.s32.totalorder %s30, 0
      %p162 = por %p160, %p161
      %s164 = sadd.s32 %s163, 1
      %p167 = scmp.eq.s32.totalorder %s24, 1
      %p168 = scmp.ne.s32.totalorder %s163, %s165
      %p169 = scmp.eq.s32.totalorder %s24, 0
      %p170 = por %p168, %p169
      %p171 = scmp.ne.s32.totalorder %s163, %s165
      %p172 = scmp.eq.s32.totalorder %s29, 1
      %p173 = por %p171, %p172
      %p174 = scmp.ne.s32.totalorder %s165, %s166
      %p175 = scmp.eq.s32.totalorder %s29, 0
      %p176 = por %p174, %p175
      %p177 = scmp.ne.s32.totalorder %s165, %s166
      %p178 = scmp.eq.s32.totalorder %s30, 1
      %p179 = por %p177, %p178
      %p181 = scmp.ne.s32.totalorder %s166, %s180
      %p182 = scmp.eq.s32.totalorder %s30, 0
      %p183 = por %p181, %p182
      %s185 = sadd.s32 %s184, 1
      %p188 = scmp.eq.s32.totalorder %s24, 1
      %p189 = scmp.ne.s32.totalorder %s184, %s186
      %p190 = scmp.eq.s32.totalorder %s24, 0
      %p191 = por %p189, %p190
      %p192 = scmp.ne.s32.totalorder %s184, %s186
      %p193 = scmp.eq.s32.totalorder %s29, 1
      %p194 = por %p192, %p193
      %p195 = scmp.ne.s32.totalorder %s186, %s187
      %p196 = scmp.eq.s32.totalorder %s29, 0
      %p197 = por %p195, %p196
      %p198 = scmp.ne.s32.totalorder %s186, %s187
      %p199 = scmp.eq.s32.totalorder %s30, 1
      %p200 = por %p198, %p199
      %p202 = scmp.ne.s32.totalorder %s187, %s201
      %p203 = scmp.eq.s32.totalorder %s30, 0
      %p204 = por %p202, %p203
      %s206 = sadd.s32 %s205, 1
      %p209 = scmp.eq.s32.totalorder %s24, 1
      %p210 = scmp.ne.s32.totalorder %s205, %s207
      %p211 = scmp.eq.s32.totalorder %s24, 0
      %p212 = por %p210, %p211
      %p213 = scmp.ne.s32.totalorder %s205, %s207
      %p214 = scmp.eq.s32.totalorder %s29, 1
      %p215 = por %p213, %p214
      %p216 = scmp.ne.s32.totalorder %s207, %s208
      %p217 = scmp.eq.s32.totalorder %s29, 0
      %p218 = por %p216, %p217
      %p219 = scmp.ne.s32.totalorder %s207, %s208
      %p220 = scmp.eq.s32.totalorder %s30, 1
      %p221 = por %p219, %p220
      %p223 = scmp.ne.s32.totalorder %s208, %s222
      %p224 = scmp.eq.s32.totalorder %s30, 0
      %p225 = por %p223, %p224
      %s227 = sadd.s32 %s226, 1
      %p230 = scmp.eq.s32.totalorder %s24, 1
      %p231 = scmp.ne.s32.totalorder %s226, %s228
      %p232 = scmp.eq.s32.totalorder %s24, 0
      %p233 = por %p231, %p232
      %p234 = scmp.ne.s32.totalorder %s226, %s228
      %p235 = scmp.eq.s32.totalorder %s29, 1
      %p236 = por %p234, %p235
      %p237 = scmp.ne.s32.totalorder %s228, %s229
      %p238 = scmp.eq.s32.totalorder %s29, 0
      %p239 = por %p237, %p238
      %p240 = scmp.ne.s32.totalorder %s228, %s229
      %p241 = scmp.eq.s32.totalorder %s30, 1
      %p242 = por %p240, %p241
      %p244 = scmp.ne.s32.totalorder %s229, %s243
      %p245 = scmp.eq.s32.totalorder %s30, 0
      %p246 = por %p244, %p245
      %s248 = sadd.s32 %s247, 1
      %p251 = scmp.eq.s32.totalorder %s24, 1
      %p252 = scmp.ne.s32.totalorder %s247, %s249
      %p253 = scmp.eq.s32.totalorder %s24, 0
      %p254 = por %p252, %p253
      %p255 = scmp.ne.s32.totalorder %s247, %s249
      %p256 = scmp.eq.s32.totalorder %s29, 1
      %p257 = por %p255, %p256
      %p258 = scmp.ne.s32.totalorder %s249, %s250
      %p259 = scmp.eq.s32.totalorder %s29, 0
      %p260 = por %p258, %p259
      %p261 = scmp.ne.s32.totalorder %s249, %s250
      %p262 = scmp.eq.s32.totalorder %s30, 1
      %p263 = por %p261, %p262
      %p265 = scmp.ne.s32.totalorder %s250, %s264
      %p266 = scmp.eq.s32.totalorder %s30, 0
      %p267 = por %p265, %p266
      %s269 = sadd.s32 %s268, 1
      %p272 = scmp.eq.s32.totalorder %s24, 1
      %p273 = scmp.ne.s32.totalorder %s268, %s270
      %p274 = scmp.eq.s32.totalorder %s24, 0
      %p275 = por %p273, %p274
      %p276 = scmp.ne.s32.totalorder %s268, %s270
      %p277 = scmp.eq.s32.totalorder %s29, 1
      %p278 = por %p276, %p277
      %p279 = scmp.ne.s32.totalorder %s270, %s271
      %p280 = scmp.eq.s32.totalorder %s29, 0
      %p281 = por %p279, %p280
      %p282 = scmp.ne.s32.totalorder %s270, %s271
      %p283 = scmp.eq.s32.totalorder %s30, 1
      %p284 = por %p282, %p283
      %p286 = scmp.ne.s32.totalorder %s271, %s285
      %p287 = scmp.eq.s32.totalorder %s30, 0
      %p288 = por %p286, %p287
      %s290 = sadd.s32 %s289, 1
      %p293 = scmp.eq.s32.totalorder %s24, 1
      %p294 = scmp.ne.s32.totalorder %s289, %s291
      %p295 = scmp.eq.s32.totalorder %s24, 0
      %p296 = por %p294, %p295
      %p297 = scmp.ne.s32.totalorder %s289, %s291
      %p298 = scmp.eq.s32.totalorder %s29, 1
      %p299 = por %p297, %p298
      %p300 = scmp.ne.s32.totalorder %s291, %s292
      %p301 = scmp.eq.s32.totalorder %s29, 0
      %p302 = por %p300, %p301
      %p303 = scmp.ne.s32.totalorder %s291, %s292
      %p304 = scmp.eq.s32.totalorder %s30, 1
      %p305 = por %p303, %p304
      %p307 = scmp.ne.s32.totalorder %s292, %s306
      %p308 = scmp.eq.s32.totalorder %s30, 0
      %p309 = por %p307, %p308
      %s311 = sadd.s32 %s310, 1
      %p314 = scmp.eq.s32.totalorder %s24, 1
      %p315 = scmp.ne.s32.totalorder %s310, %s312
      %p316 = scmp.eq.s32.totalorder %s24, 0
      %p317 = por %p315, %p316
      %p318 = scmp.ne.s32.totalorder %s310, %s312
      %p319 = scmp.eq.s32.totalorder %s29, 1
      %p320 = por %p318, %p319
      %p321 = scmp.ne.s32.totalorder %s312, %s313
      %p322 = scmp.eq.s32.totalorder %s29, 0
      %p323 = por %p321, %p322
      %p324 = scmp.ne.s32.totalorder %s312, %s313
      %p325 = scmp.eq.s32.totalorder %s30, 1
      %p326 = por %p324, %p325
      %p328 = scmp.ne.s32.totalorder %s313, %s327
      %p329 = scmp.eq.s32.totalorder %s30, 0
      %p330 = por %p328, %p329
      %s332 = sadd.s32 %s331, 1
      %p335 = scmp.eq.s32.totalorder %s24, 1
      %p336 = scmp.ne.s32.totalorder %s331, %s333
      %p337 = scmp.eq.s32.totalorder %s24, 0
      %p338 = por %p336, %p337
      %p339 = scmp.ne.s32.totalorder %s331, %s333
      %p340 = scmp.eq.s32.totalorder %s29, 1
      %p341 = por %p339, %p340
      %p342 = scmp.ne.s32.totalorder %s333, %s334
      %p343 = scmp.eq.s32.totalorder %s29, 0
      %p344 = por %p342, %p343
      %p345 = scmp.ne.s32.totalorder %s333, %s334
      %p346 = scmp.eq.s32.totalorder %s30, 1
      %p347 = por %p345, %p346
      %p349 = scmp.ne.s32.totalorder %s334, %s348
      %p350 = scmp.eq.s32.totalorder %s30, 0
      %p351 = por %p349, %p350
      %s352 = ssub.s32 %s24, %s31
      %p353 = scmp.eq.s32.totalorder %s352, 0
      %s355 = sadd.s32 %s354, 1
      %s356 = scalar_select %p353, %s354, %s355
      %p359 = pneg %p353
      %p360 = scmp.eq.s32.totalorder %s24, 1
      %p361 = por %p359, %p360
      %p362 = scmp.ne.s32.totalorder %s354, %s357
      %p363 = scmp.eq.s32.totalorder %s24, 0
      %p364 = por %p362, %p363
      %p365 = scmp.ne.s32.totalorder %s354, %s357
      %p366 = scmp.eq.s32.totalorder %s29, 1
      %p367 = por %p365, %p366
      %p368 = scmp.ne.s32.totalorder %s357, %s358
      %p369 = scmp.eq.s32.totalorder %s29, 0
      %p370 = por %p368, %p369
      %p371 = scmp.ne.s32.totalorder %s357, %s358
      %p372 = scmp.eq.s32.totalorder %s30, 1
      %p373 = por %p371, %p372
      %p375 = scmp.ne.s32.totalorder %s358, %s374
      %p376 = scmp.eq.s32.totalorder %s30, 0
      %p377 = por %p375, %p376
      %p378 = scmp.le.s32.totalorder 1, %s24
      %p379 = scmp.lt.s32.totalorder %s24, 3
      %p380 = pnand %p378, %p379
      %p381 = pneg %p380
      // Predicated region
      $region9: #{tpu_custom_call.1} parent=5 // pred_check
        _
      $region10: #{tpu_custom_call.1} parent=5 // pred_check_branch
        %383 = sbr.rel (%p380) target = $region12
      $region11: #{tpu_custom_call.1} parent=5 // pred_region
        %s384 = ssub.s32 %s24, 1
        // Predicated region
        $region13: #{tpu_custom_call.1} parent=11 // pred_check
          %p385 = pneg %p71
        $region14: #{tpu_custom_call.1} parent=11 // pred_check_branch
          %387 = sbr.rel (%p385) target = $region16
        $region15: #{tpu_custom_call.1} parent=11 // pred_region
          _
        $region16: #{tpu_custom_call.1} parent=11 // pred_fallthru
          _
        // Predicated region
        $region17: #{tpu_custom_call.1} parent=11 // pred_check
          %p388 = pneg %p92
        $region18: #{tpu_custom_call.1} parent=11 // pred_check_branch
          %390 = sbr.rel (%p388) target = $region20
        $region19: #{tpu_custom_call.1} parent=11 // pred_region
          _
        $region20: #{tpu_custom_call.1} parent=11 // pred_fallthru
          _
        // Predicated region
        $region21: #{tpu_custom_call.1} parent=11 // pred_check
          %p391 = pneg %p113
        $region22: #{tpu_custom_call.1} parent=11 // pred_check_branch
          %393 = sbr.rel (%p391) target = $region24
        $region23: #{tpu_custom_call.1} parent=11 // pred_region
          _
        $region24: #{tpu_custom_call.1} parent=11 // pred_fallthru
          _
        // Predicated region
        $region25: #{tpu_custom_call.1} parent=11 // pred_check
          %p394 = pneg %p134
        $region26: #{tpu_custom_call.1} parent=11 // pred_check_branch
          %396 = sbr.rel (%p394) target = $region28
        $region27: #{tpu_custom_call.1} parent=11 // pred_region
          _
        $region28: #{tpu_custom_call.1} parent=11 // pred_fallthru
          _
        // Predicated region
        $region29: #{tpu_custom_call.1} parent=11 // pred_check
          %p397 = pneg %p155
        $region30: #{tpu_custom_call.1} parent=11 // pred_check_branch
          %399 = sbr.rel (%p397) target = $region32
        $region31: #{tpu_custom_call.1} parent=11 // pred_region
          _
        $region32: #{tpu_custom_call.1} parent=11 // pred_fallthru
          _
        // Predicated region
        $region33: #{tpu_custom_call.1} parent=11 // pred_check
          %p400 = pneg %p176
        $region34: #{tpu_custom_call.1} parent=11 // pred_check_branch
          %402 = sbr.rel (%p400) target = $region36
        $region35: #{tpu_custom_call.1} parent=11 // pred_region
          _
        $region36: #{tpu_custom_call.1} parent=11 // pred_fallthru
          _
        // Predicated region
        $region37: #{tpu_custom_call.1} parent=11 // pred_check
          %p403 = pneg %p197
        $region38: #{tpu_custom_call.1} parent=11 // pred_check_branch
          %405 = sbr.rel (%p403) target = $region40
        $region39: #{tpu_custom_call.1} parent=11 // pred_region
          _
        $region40: #{tpu_custom_call.1} parent=11 // pred_fallthru
          _
        // Predicated region
        $region41: #{tpu_custom_call.1} parent=11 // pred_check
          %p406 = pneg %p218
        $region42: #{tpu_custom_call.1} parent=11 // pred_check_branch
          %408 = sbr.rel (%p406) target = $region44
        $region43: #{tpu_custom_call.1} parent=11 // pred_region
          _
        $region44: #{tpu_custom_call.1} parent=11 // pred_fallthru
          _
        // Predicated region
        $region45: #{tpu_custom_call.1} parent=11 // pred_check
          %p409 = pneg %p239
        $region46: #{tpu_custom_call.1} parent=11 // pred_check_branch
          %411 = sbr.rel (%p409) target = $region48
        $region47: #{tpu_custom_call.1} parent=11 // pred_region
          _
        $region48: #{tpu_custom_call.1} parent=11 // pred_fallthru
          _
        // Predicated region
        $region49: #{tpu_custom_call.1} parent=11 // pred_check
          %p412 = pneg %p260
        $region50: #{tpu_custom_call.1} parent=11 // pred_check_branch
          %414 = sbr.rel (%p412) target = $region52
        $region51: #{tpu_custom_call.1} parent=11 // pred_region
          _
        $region52: #{tpu_custom_call.1} parent=11 // pred_fallthru
          _
        // Predicated region
        $region53: #{tpu_custom_call.1} parent=11 // pred_check
          %p415 = pneg %p281
        $region54: #{tpu_custom_call.1} parent=11 // pred_check_branch
          %417 = sbr.rel (%p415) target = $region56
        $region55: #{tpu_custom_call.1} parent=11 // pred_region
          _
        $region56: #{tpu_custom_call.1} parent=11 // pred_fallthru
          _
        // Predicated region
        $region57: #{tpu_custom_call.1} parent=11 // pred_check
          %p418 = pneg %p302
        $region58: #{tpu_custom_call.1} parent=11 // pred_check_branch
          %420 = sbr.rel (%p418) target = $region60
        $region59: #{tpu_custom_call.1} parent=11 // pred_region
          _
        $region60: #{tpu_custom_call.1} parent=11 // pred_fallthru
          _
        // Predicated region
        $region61: #{tpu_custom_call.1} parent=11 // pred_check
          %p421 = pneg %p323
        $region62: #{tpu_custom_call.1} parent=11 // pred_check_branch
          %423 = sbr.rel (%p421) target = $region64
        $region63: #{tpu_custom_call.1} parent=11 // pred_region
          _
        $region64: #{tpu_custom_call.1} parent=11 // pred_fallthru
          _
        // Predicated region
        $region65: #{tpu_custom_call.1} parent=11 // pred_check
          %p424 = pneg %p344
        $region66: #{tpu_custom_call.1} parent=11 // pred_check_branch
          %426 = sbr.rel (%p424) target = $region68
        $region67: #{tpu_custom_call.1} parent=11 // pred_region
          _
        $region68: #{tpu_custom_call.1} parent=11 // pred_fallthru
          _
      $region12: #{tpu_custom_call.1} parent=5 // pred_fallthru
        _
      %p427 = scmp.lt.s32.totalorder %s24, 2
      // Predicated region
      $region69: #{tpu_custom_call.1} parent=5 // pred_check
        %p428 = pneg %p427
      $region70: #{tpu_custom_call.1} parent=5 // pred_check_branch
        %430 = sbr.rel (%p428) target = $region72
      $region71: #{tpu_custom_call.1} parent=5 // pred_region
        // Predicated region
        $region73: #{tpu_custom_call.1} parent=71 // pred_check
          %p431 = pneg %p44
        $region74: #{tpu_custom_call.1} parent=71 // pred_check_branch
          %433 = sbr.rel (%p431) target = $region76
        $region75: #{tpu_custom_call.1} parent=71 // pred_region
          %p434 = scmp.lt.s32.totalorder %s24, 1
          %s435 = scalar_select %p434, %s24, 1
          %s436 = smul.addr %s435, 2
          %s437 = scalar_lea.vmem %s0, %s436
        $region76: #{tpu_custom_call.1} parent=71 // pred_fallthru
          _
      $region72: #{tpu_custom_call.1} parent=5 // pred_fallthru
        _
      %p438 = scmp.le.s32.totalorder 1, %s24
      %p439 = scmp.lt.s32.totalorder %s24, 3
      %p440 = pnand %p438, %p439
      %p441 = pneg %p440
      // Predicated region
      $region77: #{tpu_custom_call.1} parent=5 // pred_check
        _
      $region78: #{tpu_custom_call.1} parent=5 // pred_check_branch
        %443 = sbr.rel (%p440) target = $region80
      $region79: #{tpu_custom_call.1} parent=5 // pred_region
        %s444 = ssub.s32 %s24, 1
        %p445 = scmp.lt.s32.totalorder %s29, 1
        %s446 = scalar_select %p445, %s29, 1
        %s447 = smul.addr %s446, 2
        %s448 = scalar_lea.vmem %s0, %s447
        %p449 = pneg %p50
        %p450 = pneg %p47
        %p451 = pneg %p71
        %p452 = pneg %p68
        %p453 = pneg %p92
        %p454 = pneg %p89
        %p455 = pneg %p113
        %p456 = pneg %p110
        %p457 = pneg %p134
        %p458 = pneg %p131
        %p459 = pneg %p155
        %p460 = pneg %p152
        %p461 = pneg %p176
        %p462 = pneg %p173
        %p463 = pneg %p197
        %p464 = pneg %p194
        %p465 = pneg %p218
        %p466 = pneg %p215
        %p467 = pneg %p239
        %p468 = pneg %p236
        %p469 = pneg %p260
        %p470 = pneg %p257
        %p471 = pneg %p281
        %p472 = pneg %p278
        %p473 = pneg %p302
        %p474 = pneg %p299
        %p475 = pneg %p323
        %p476 = pneg %p320
        %p477 = pneg %p344
        %p478 = pneg %p341
        %p479 = pneg %p370
        %p480 = pneg %p367
        %s481 = sand.u32 %s357, 1
        %s482 = scalar_lea.sflag [#allocation5], %s481
        %s483 = sand.u32 %s357, 1
        %s484 = smul.addr %s483, 8
        %s485 = scalar_lea.vmem [#allocation4], %s484
        %p486 = scmp.lt.s32.totalorder %s29, 1
        %s487 = scalar_select %p486, %s29, 1
        %s488 = smul.addr %s487, 2
        %s489 = scalar_lea.vmem %s0, %s488
        %v491 = vld [vmem:[%s489] sm:$0x3]
        %v492 = vld [vmem:[%s1] sm:$0xf]
        %v493 = vld [vmem:[%s2] sm:$0xff]
        %495 = vset.pattern.permute.xlu0 0
        %496 = vperm.xlu0 %495, %v493
        %v497 = vpop.permute.xlu0 %496
        %vm499 = vcmask 31744
        %v501 = vsel %vm499, %v492, 0
        %vm503 = vcmask 1041408
        %v505 = vsel %vm503, %v491, 0
        %507 = vmatprep.subr.bf16.mxu0 0
        %508 = vmatpush1.bf16.msra.mxu0 %v505
        %509 = vmatprep.subr.bf16.mxu0 0
        %510 = vmatpush1.bf16.msra.mxu0 0
        %511 = vmatprep.subr.bf16.mxu0 0
        %512 = vmatpush1.bf16.msra.mxu0 0
        %513 = vmatprep.subr.bf16.mxu0 0
        %514 = vmatpush1.bf16.msra.mxu0 0
        %515 = vmatprep.subr.bf16.mxu0 0
        %516 = vmatpush1.bf16.msra.mxu0 0
        %517 = vmatprep.subr.bf16.mxu0 0
        %518 = vmatpush1.bf16.msra.mxu0 0
        %519 = vmatprep.subr.bf16.mxu0 0
        %520 = vmatpush1.bf16.msra.mxu0 0
        %521 = vmatprep.subr.bf16.mxu0 0
        %522 = vmatpush1.bf16.msra.mxu0 0
        %523 = vmatprep.subr.bf16.mxu0 0
        %524 = vmatpush1.bf16.msra.mxu0 0
        %525 = vmatprep.subr.bf16.mxu0 0
        %526 = vmatpush1.bf16.msra.mxu0 0
        %527 = vmatprep.subr.bf16.mxu0 0
        %528 = vmatpush1.bf16.msra.mxu0 0
        %529 = vmatprep.subr.bf16.mxu0 0
        %530 = vmatpush1.bf16.msra.mxu0 0
        %531 = vmatprep.subr.bf16.mxu0 0
        %532 = vmatpush1.bf16.msra.mxu0 0
        %533 = vmatprep.subr.bf16.mxu0 0
        %534 = vmatpush1.bf16.msra.mxu0 0
        %535 = vmatprep.subr.bf16.mxu0 0
        %536 = vmatpush1.bf16.msra.mxu0 0
        %537 = vmatprep.subr.bf16.mxu0 0
        %538 = vmatpush1.bf16.msra.mxu0 0
        %539 = vmatprep.mubr.bf16.mxu0 0
        %540 = vmatmul.mubr.bf16.gmra.mrb[0].mxu0 %v501
        %v541 = vpop.f32.mrb[0].mxu0
        %v542 = vadd.f32 %v497, %v541
        %v543 = vpop.f32.mrb[0].mxu0
        %v544 = vpop.f32.mrb[0].mxu0
        %v545 = vpop.f32.mrb[0].mxu0
        %546 = vdwg.mxu0
        %v547 = vld [vmem:[%s3] sm:$0xff]
        %v548 = vld [vmem:[%s4] sm:$0xff]
        %v549 = vrot.slane %v542, 4
        %v550 = vadd.f32 %v542, %v549
        %v551 = vrot.slane %v550, 2
        %v552 = vadd.f32 %v550, %v551
        %v553 = vrot.slane %v552, 1
        %v554 = vadd.f32 %v552, %v553
        %v555 = vrcp.pop 8.0
        %v556 = vmul.f32 %v554, %v555
        %v557 = vsub.f32 %v542, %v556
        %v558 = vmul.f32 %v557, %v557
        %v559 = vrot.slane %v558, 4
        %v560 = vadd.f32 %v558, %v559
        %v561 = vrot.slane %v560, 2
        %v562 = vadd.f32 %v560, %v561
        %v563 = vrot.slane %v562, 1
        %v564 = vadd.f32 %v562, %v563
        %v565 = vmul.f32 %v564, 0.14285715
        %v566 = vrsqrt.pop %v565
        %v567 = vmul.f32 %v565, %v566
        %vm568 = vcmp.eq.f32.partialorder %v565, inf
        %v569 = vsel %vm568, %v565, %v567
        %vm570 = vcmp.eq.f32.partialorder %v565, 0.0
        %v571 = vand.u32 %v565, 2147483648
        %v572 = vsel %vm570, %v571, %v569
        %v573 = vadd.f32 %v572, 1e-06
        %v574 = vrcp.pop %v573
        %v575 = vmul.f32 %v557, %v574
        %577 = vset.pattern.permute.xlu0 0
        %578 = vperm.xlu0 %577, %v547
        %v579 = vpop.permute.xlu0 %578
        %v581 = vmul.f32 %v579, %v575
        %583 = vset.pattern.permute.xlu0 0
        %584 = vperm.xlu0 %583, %v548
        %v585 = vpop.permute.xlu0 %584
        %v587 = vadd.f32 %v581, %v585
        %v588 = vlaneseq
        %v589 = vand.u32 %v588, 127
        %vm590 = vcmp.lt.s32.totalorder %v589, 4
        %591 = vrot.lane.b32.xlu0 %v587, 4
        %v592 = vpop.permute.xlu0 %591
        %v593 = vsel %vm590, 0.0, %v592
        %v594 = vpack.c.bf16 0.0, %v593
        %595 = vst [vmem:[#allocation2] sm:$0xff] %v594
        %vm596 = vcmp.lt.s32.totalorder %v589, 3
        %597 = vrot.lane.b32.xlu0 %v587, 3
        %v598 = vpop.permute.xlu0 %597
        %v599 = vsel %vm596, 0.0, %v598
        %v600 = vpack.c.bf16 0.0, %v599
        %601 = vst [vmem:[#allocation2 + $0x8] sm:$0xff] %v600
        %vm602 = vcmp.lt.s32.totalorder %v589, 2
        %603 = vrot.lane.b32.xlu0 %v587, 2
        %v604 = vpop.permute.xlu0 %603
        %v605 = vsel %vm602, 0.0, %v604
        %v606 = vpack.c.bf16 0.0, %v605
        %607 = vst [vmem:[#allocation2 + $0x10] sm:$0xff] %v606
        %vm608 = vcmp.lt.s32.totalorder %v589, 1
        %609 = vrot.lane.b32.xlu0 %v587, 1
        %v610 = vpop.permute.xlu0 %609
        %v611 = vsel %vm608, 0.0, %v610
        %v612 = vpack.c.bf16 0.0, %v611
        %613 = vst [vmem:[#allocation2 + $0x18] sm:$0xff] %v612
        %v614 = vpack.c.bf16 0.0, %v587
        %615 = vst [vmem:[#allocation2 + $0x20] sm:$0xff] %v614
        %v616 = vld [vmem:[%s9] sm:$0xf]
        %v617 = vld [vmem:[%s9 + $0x4] sm:$0xf]
        %v618 = vld [vmem:[%s9 + $0x8] sm:$0xf]
        %v619 = vld [vmem:[%s9 + $0xc] sm:$0x1]
        %v620 = vld [vmem:[#allocation2] sm:$0xff]
        %v621 = vld [vmem:[#allocation2 + $0x8] sm:$0xff]
        %v622 = vld [vmem:[#allocation2 + $0x10] sm:$0xff]
        %v623 = vld [vmem:[#allocation2 + $0x18] sm:$0xff]
        %v624 = vld [vmem:[#allocation2 + $0x20] sm:$0xff]
        %v625 = vld [vmem:[%s10] sm:$0xff]
        %v626 = vld [vmem:[%s10 + $0x8] sm:$0xff]
        %v627 = vld [vmem:[%s10 + $0x10] sm:$0xff]
        %v628 = vld [vmem:[%s10 + $0x18] sm:$0x1]
        %630 = vset.pattern.permute.xlu0 0
        %631 = vperm.xlu0 %630, %v625
        %v632 = vpop.permute.xlu0 %631
        %635 = vset.pattern.permute.xlu0 0
        %636 = vperm.xlu0 %635, %v626
        %v637 = vpop.permute.xlu0 %636
        %640 = vset.pattern.permute.xlu0 0
        %641 = vperm.xlu0 %640, %v627
        %v642 = vpop.permute.xlu0 %641
        %645 = vset.pattern.permute.xlu0 0
        %646 = vperm.xlu0 %645, %v628
        %v647 = vpop.permute.xlu0 %646
        %v653 = vunpack.c.l.b16 %v616
        %v654 = vunpack.c.l.b16 %v617
        %v655 = vunpack.c.l.b16 %v618
        %v656 = vunpack.c.l.b16 %v619
        %v657 = vpack.c.b16 %v654, %v653
        %v658 = vpack.c.b16 %v656, %v655
        %vm659 = vcmask 654336
        %v661 = vsel %vm659, %v657, 0
        %v664 = vsel %vm659, %v658, 0
        %666 = vmatprep.subr.bf16.mxu0 0
        %667 = vmatpush1.bf16.msra.mxu0 %v620
        %668 = vmatprep.subr.bf16.mxu0 0
        %669 = vmatpush1.bf16.msra.mxu0 %v621
        %670 = vmatprep.subr.bf16.mxu0 0
        %671 = vmatpush1.bf16.msra.mxu0 %v622
        %672 = vmatprep.subr.bf16.mxu0 0
        %673 = vmatpush1.bf16.msra.mxu0 %v623
        %674 = vmatprep.subr.bf16.mxu0 0
        %675 = vmatpush1.bf16.msra.mxu0 %v624
        %676 = vmatprep.subr.bf16.mxu0 0
        %677 = vmatpush1.bf16.msra.mxu0 0
        %678 = vmatprep.subr.bf16.mxu0 0
        %679 = vmatpush1.bf16.msra.mxu0 0
        %680 = vmatprep.subr.bf16.mxu0 0
        %681 = vmatpush1.bf16.msra.mxu0 0
        %682 = vmatprep.subr.bf16.mxu0 0
        %683 = vmatpush1.bf16.msra.mxu0 0
        %684 = vmatprep.subr.bf16.mxu0 0
        %685 = vmatpush1.bf16.msra.mxu0 0
        %686 = vmatprep.subr.bf16.mxu0 0
        %687 = vmatpush1.bf16.msra.mxu0 0
        %688 = vmatprep.subr.bf16.mxu0 0
        %689 = vmatpush1.bf16.msra.mxu0 0
        %690 = vmatprep.subr.bf16.mxu0 0
        %691 = vmatpush1.bf16.msra.mxu0 0
        %692 = vmatprep.subr.bf16.mxu0 0
        %693 = vmatpush1.bf16.msra.mxu0 0
        %694 = vmatprep.subr.bf16.mxu0 0
        %695 = vmatpush1.bf16.msra.mxu0 0
        %696 = vmatprep.subr.bf16.mxu0 0
        %697 = vmatpush1.bf16.msra.mxu0 0
        %698 = vmatprep.mubr.bf16.mxu0 0
        %699 = vmatmul.mubr.bf16.gmra.mrb[0].mxu0 %v661
        %v700 = vpop.f32.mrb[0].mxu0
        %v701 = vadd.f32 %v632, %v700
        %v702 = vpop.f32.mrb[0].mxu0
        %v703 = vpop.f32.mrb[0].mxu0
        %v704 = vadd.f32 %v637, %v703
        %v705 = vpop.f32.mrb[0].mxu0
        %706 = vmatprep.mubr.bf16.mxu0 0
        %707 = vmatmul.mubr.bf16.gmra.mrb[0].mxu0 %v664
        %v708 = vpop.f32.mrb[0].mxu0
        %v709 = vadd.f32 %v642, %v708
        %v710 = vpop.f32.mrb[0].mxu0
        %v711 = vpop.f32.mrb[0].mxu0
        %v712 = vadd.f32 %v647, %v711
        %v713 = vpop.f32.mrb[0].mxu0
        %714 = vdwg.mxu0
        %v715 = vpack.c.bf16 %v701, %v701
        %v716 = vpack.c.bf16 %v704, %v704
        %v717 = vpack.c.bf16 %v712, %v709
        %718 = vxpose.xlu0.c.b16.start [1/8] %v715, 128
        %719 = vxpose.xlu0.c.b16.cont [2/8] 0, 128
        %720 = vxpose.xlu0.c.b16.cont [3/8] 0, 128
        %721 = vxpose.xlu0.c.b16.cont [4/8] 0, 128
        %722 = vxpose.xlu0.c.b16.cont [5/8] 0, 128
        %723 = vxpose.xlu0.c.b16.cont [6/8] 0, 128
        %724 = vxpose.xlu0.c.b16.cont [7/8] 0, 128
        %725 = vxpose.xlu0.c.b16.end [8/8] 0, 128
        %v726 = vpop.trf.xlu0
        %v727 = vpop.trf.xlu0
        %v728 = vpop.trf.xlu0
        %v729 = vpop.trf.xlu0
        %v730 = vpop.trf.xlu0
        %v731 = vpop.trf.xlu0
        %v732 = vpop.trf.xlu0
        %v733 = vpop.trf.xlu0
        %vm734 = vcmask 64512
        %v736 = vsel %vm734, %v726, 0
        %v739 = vsel %vm734, %v727, 0
        %v742 = vsel %vm734, %v728, 0
        %v745 = vsel %vm734, %v729, 0
        %v748 = vsel %vm734, %v730, 0
        %v751 = vsel %vm734, %v731, 0
        %v754 = vsel %vm734, %v732, 0
        %v757 = vsel %vm734, %v733, 0
        %vm759 = vcmask 1043456
        %v761 = vsel %vm759, %v716, 0
        %763 = vmatprep.subr.bf16.mxu0 0
        %764 = vmatpush1.bf16.msra.mxu0 %v761
        %765 = vmatprep.subr.bf16.mxu0 0
        %766 = vmatpush1.bf16.msra.mxu0 0
        %767 = vmatprep.subr.bf16.mxu0 0
        %768 = vmatpush1.bf16.msra.mxu0 0
        %769 = vmatprep.subr.bf16.mxu0 0
        %770 = vmatpush1.bf16.msra.mxu0 0
        %771 = vmatprep.subr.bf16.mxu0 0
        %772 = vmatpush1.bf16.msra.mxu0 0
        %773 = vmatprep.subr.bf16.mxu0 0
        %774 = vmatpush1.bf16.msra.mxu0 0
        %775 = vmatprep.subr.bf16.mxu0 0
        %776 = vmatpush1.bf16.msra.mxu0 0
        %777 = vmatprep.subr.bf16.mxu0 0
        %778 = vmatpush1.bf16.msra.mxu0 0
        %779 = vmatprep.subr.bf16.mxu0 0
        %780 = vmatpush1.bf16.msra.mxu0 0
        %781 = vmatprep.subr.bf16.mxu0 0
        %782 = vmatpush1.bf16.msra.mxu0 0
        %783 = vmatprep.subr.bf16.mxu0 0
        %784 = vmatpush1.bf16.msra.mxu0 0
        %785 = vmatprep.subr.bf16.mxu0 0
        %786 = vmatpush1.bf16.msra.mxu0 0
        %787 = vmatprep.subr.bf16.mxu0 0
        %788 = vmatpush1.bf16.msra.mxu0 0
        %789 = vmatprep.subr.bf16.mxu0 0
        %790 = vmatpush1.bf16.msra.mxu0 0
        %791 = vmatprep.subr.bf16.mxu0 0
        %792 = vmatpush1.bf16.msra.mxu0 0
        %793 = vmatprep.subr.bf16.mxu0 0
        %794 = vmatpush1.bf16.msra.mxu0 0
        %795 = vmatprep.mubr.bf16.mxu0 0
        %796 = vmatmul.mubr.bf16.gmra.mrb[0].mxu0 %v736
        %v797 = vpop.f32.mrb[0].mxu0
        %v798 = vadd.f32 0.0, %v797
        %v799 = vpop.f32.mrb[0].mxu0
        %v800 = vpop.f32.mrb[0].mxu0
        %v801 = vadd.f32 0.0, %v800
        %v802 = vpop.f32.mrb[0].mxu0
        %803 = vmatprep.mubr.bf16.mxu0 0
        %804 = vmatmul.mubr.bf16.gmra.mrb[0].mxu0 %v739
        %v805 = vpop.f32.mrb[0].mxu0
        %v806 = vadd.f32 0.0, %v805
        %v807 = vpop.f32.mrb[0].mxu0
        %v808 = vpop.f32.mrb[0].mxu0
        %v809 = vadd.f32 0.0, %v808
        %v810 = vpop.f32.mrb[0].mxu0
        %811 = vmatprep.mubr.bf16.mxu0 0
        %812 = vmatmul.mubr.bf16.gmra.mrb[0].mxu0 %v742
        %v813 = vpop.f32.mrb[0].mxu0
        %v814 = vadd.f32 0.0, %v813
        %v815 = vpop.f32.mrb[0].mxu0
        %v816 = vpop.f32.mrb[0].mxu0
        %v817 = vadd.f32 0.0, %v816
        %v818 = vpop.f32.mrb[0].mxu0
        %819 = vmatprep.mubr.bf16.mxu0 0
        %820 = vmatmul.mubr.bf16.gmra.mrb[0].mxu0 %v745
        %v821 = vpop.f32.mrb[0].mxu0
        %v822 = vadd.f32 0.0, %v821
        %v823 = vpop.f32.mrb[0].mxu0
        %v824 = vpop.f32.mrb[0].mxu0
        %v825 = vadd.f32 0.0, %v824
        %v826 = vpop.f32.mrb[0].mxu0
        %827 = vmatprep.mubr.bf16.mxu0 0
        %828 = vmatmul.mubr.bf16.gmra.mrb[0].mxu0 %v748
        %v829 = vpop.f32.mrb[0].mxu0
        %v830 = vadd.f32 0.0, %v829
        %v831 = vpop.f32.mrb[0].mxu0
        %v832 = vpop.f32.mrb[0].mxu0
        %v833 = vadd.f32 0.0, %v832
        %v834 = vpop.f32.mrb[0].mxu0
        %835 = vmatprep.mubr.bf16.mxu0 0
        %836 = vmatmul.mubr.bf16.gmra.mrb[0].mxu0 %v751
        %v837 = vpop.f32.mrb[0].mxu0
        %v838 = vadd.f32 0.0, %v837
        %v839 = vpop.f32.mrb[0].mxu0
        %v840 = vpop.f32.mrb[0].mxu0
        %v841 = vadd.f32 0.0, %v840
        %v842 = vpop.f32.mrb[0].mxu0
        %843 = vmatprep.mubr.bf16.mxu0 0
        %844 = vmatmul.mubr.bf16.gmra.mrb[0].mxu0 %v754
        %v845 = vpop.f32.mrb[0].mxu0
        %v846 = vadd.f32 0.0, %v845
        %v847 = vpop.f32.mrb[0].mxu0
        %v848 = vpop.f32.mrb[0].mxu0
        %v849 = vadd.f32 0.0, %v848
        %v850 = vpop.f32.mrb[0].mxu0
        %851 = vmatprep.mubr.bf16.mxu0 0
        %852 = vmatmul.mubr.bf16.gmra.mrb[0].mxu0 %v757
        %v853 = vpop.f32.mrb[0].mxu0
        %v854 = vadd.f32 0.0, %v853
        %v855 = vpop.f32.mrb[0].mxu0
        %v856 = vpop.f32.mrb[0].mxu0
        %v857 = vadd.f32 0.0, %v856
        %v858 = vpop.f32.mrb[0].mxu0
        %859 = vdwg.mxu0
        %v860 = vlaneseq
        %v861 = vshrl.u32 %v860, 7
        %v862 = vadd.s32 %v861, 8
        %v863 = vadd.s32 %v861, 16
        %v864 = vadd.s32 %v861, 24
        %v865 = vadd.s32 %v861, 32
        %v866 = vadd.s32 %v861, 40
        %v867 = vadd.s32 %v861, 48
        %v868 = vadd.s32 %v861, 56
        %v869 = vadd.s32 %v861, 64
        %v870 = vadd.s32 %v861, 72
        %v871 = vadd.s32 %v861, 80
        %v872 = vadd.s32 %v861, 88
        %v873 = vadd.s32 %v861, 96
        %v874 = vadd.s32 %v861, 104
        %v875 = vadd.s32 %v861, 112
        %v876 = vadd.s32 %v861, 120
        %vm877 = vcmp.le.s32.totalorder %v589, %v861
        %vm878 = vcmp.le.s32.totalorder %v589, %v862
        %vm879 = vcmp.le.s32.totalorder %v589, %v863
        %vm880 = vcmp.le.s32.totalorder %v589, %v864
        %vm881 = vcmp.le.s32.totalorder %v589, %v865
        %vm882 = vcmp.le.s32.totalorder %v589, %v866
        %vm883 = vcmp.le.s32.totalorder %v589, %v867
        %vm884 = vcmp.le.s32.totalorder %v589, %v868
        %vm885 = vcmp.le.s32.totalorder %v589, %v869
        %vm886 = vcmp.le.s32.totalorder %v589, %v870
        %vm887 = vcmp.le.s32.totalorder %v589, %v871
        %vm888 = vcmp.le.s32.totalorder %v589, %v872
        %vm889 = vcmp.le.s32.totalorder %v589, %v873
        %vm890 = vcmp.le.s32.totalorder %v589, %v874
        %vm891 = vcmp.le.s32.totalorder %v589, %v875
        %vm892 = vcmp.le.s32.totalorder %v589, %v876
        %vm893 = vcmp.lt.s32.totalorder %v589, 16
        %vm894 = vmand %vm877, %vm893
        %vm895 = vmand %vm878, %vm893
        %vm896 = vmand %vm879, %vm893
        %vm897 = vmand %vm880, %vm893
        %vm898 = vmand %vm881, %vm893
        %vm899 = vmand %vm882, %vm893
        %vm900 = vmand %vm883, %vm893
        %vm901 = vmand %vm884, %vm893
        %vm902 = vmand %vm885, %vm893
        %vm903 = vmand %vm886, %vm893
        %vm904 = vmand %vm887, %vm893
        %vm905 = vmand %vm888, %vm893
        %vm906 = vmand %vm889, %vm893
        %vm907 = vmand %vm890, %vm893
        %vm908 = vmand %vm891, %vm893
        %vm909 = vmand %vm892, %vm893
        %v910 = vsel %vm894, %v798, -1e+09
        %v911 = vsel %vm895, %v801, -1e+09
        %v912 = vsel %vm896, %v806, -1e+09
        %v913 = vsel %vm897, %v809, -1e+09
        %v914 = vsel %vm898, %v814, -1e+09
        %v915 = vsel %vm899, %v817, -1e+09
        %v916 = vsel %vm900, %v822, -1e+09
        %v917 = vsel %vm901, %v825, -1e+09
        %v918 = vsel %vm902, %v830, -1e+09
        %v919 = vsel %vm903, %v833, -1e+09
        %v920 = vsel %vm904, %v838, -1e+09
        %v921 = vsel %vm905, %v841, -1e+09
        %v922 = vsel %vm906, %v846, -1e+09
        %v923 = vsel %vm907, %v849, -1e+09
        %v924 = vsel %vm908, %v854, -1e+09
        %v925 = vsel %vm909, %v857, -1e+09
        %926 = vmax.xlane.f32.xlu0 %v910
        %v927 = vpop.xlane.xlu0 %926
        %928 = vmax.xlane.f32.xlu0 %v911
        %v929 = vpop.xlane.xlu0 %928
        %930 = vmax.xlane.f32.xlu0 %v912
        %v931 = vpop.xlane.xlu0 %930
        %932 = vmax.xlane.f32.xlu0 %v913
        %v933 = vpop.xlane.xlu0 %932
        %934 = vmax.xlane.f32.xlu0 %v914
        %v935 = vpop.xlane.xlu0 %934
        %936 = vmax.xlane.f32.xlu0 %v915
        %v937 = vpop.xlane.xlu0 %936
        %938 = vmax.xlane.f32.xlu0 %v916
        %v939 = vpop.xlane.xlu0 %938
        %940 = vmax.xlane.f32.xlu0 %v917
        %v941 = vpop.xlane.xlu0 %940
        %942 = vmax.xlane.f32.xlu0 %v918
        %v943 = vpop.xlane.xlu0 %942
        %944 = vmax.xlane.f32.xlu0 %v919
        %v945 = vpop.xlane.xlu0 %944
        %946 = vmax.xlane.f32.xlu0 %v920
        %v947 = vpop.xlane.xlu0 %946
        %948 = vmax.xlane.f32.xlu0 %v921
        %v949 = vpop.xlane.xlu0 %948
        %950 = vmax.xlane.f32.xlu0 %v922
        %v951 = vpop.xlane.xlu0 %950
        %952 = vmax.xlane.f32.xlu0 %v923
        %v953 = vpop.xlane.xlu0 %952
        %954 = vmax.xlane.f32.xlu0 %v924
        %v955 = vpop.xlane.xlu0 %954
        %956 = vmax.xlane.f32.xlu0 %v925
        %v957 = vpop.xlane.xlu0 %956
        %v958 = vsub.f32 %v910, %v927
        %v959 = vsub.f32 %v911, %v929
        %v960 = vsub.f32 %v912, %v931
        %v961 = vsub.f32 %v913, %v933
        %v962 = vsub.f32 %v914, %v935
        %v963 = vsub.f32 %v915, %v937
        %v964 = vsub.f32 %v916, %v939
        %v965 = vsub.f32 %v917, %v941
        %v966 = vsub.f32 %v918, %v943
        %v967 = vsub.f32 %v919, %v945
        %v968 = vsub.f32 %v920, %v947
        %v969 = vsub.f32 %v921, %v949
        %v970 = vsub.f32 %v922, %v951
        %v971 = vsub.f32 %v923, %v953
        %v972 = vsub.f32 %v924, %v955
        %v973 = vsub.f32 %v925, %v957
        %v974 = vmul.f32 %v958, 1.442695
        %v975 = vpow.pop %v974
        %v976 = vmul.f32 %v959, 1.442695
        %v977 = vpow.pop %v976
        %v978 = vmul.f32 %v960, 1.442695
        %v979 = vpow.pop %v978
        %v980 = vmul.f32 %v961, 1.442695
        %v981 = vpow.pop %v980
        %v982 = vmul.f32 %v962, 1.442695
        %v983 = vpow.pop %v982
        %v984 = vmul.f32 %v963, 1.442695
        %v985 = vpow.pop %v984
        %v986 = vmul.f32 %v964, 1.442695
        %v987 = vpow.pop %v986
        %v988 = vmul.f32 %v965, 1.442695
        %v989 = vpow.pop %v988
        %v990 = vmul.f32 %v966, 1.442695
        %v991 = vpow.pop %v990
        %v992 = vmul.f32 %v967, 1.442695
        %v993 = vpow.pop %v992
        %v994 = vmul.f32 %v968, 1.442695
        %v995 = vpow.pop %v994
        %v996 = vmul.f32 %v969, 1.442695
        %v997 = vpow.pop %v996
        %v998 = vmul.f32 %v970, 1.442695
        %v999 = vpow.pop %v998
        %v1000 = vmul.f32 %v971, 1.442695
        %v1001 = vpow.pop %v1000
        %v1002 = vmul.f32 %v972, 1.442695
        %v1003 = vpow.pop %v1002
        %v1004 = vmul.f32 %v973, 1.442695
        %v1005 = vpow.pop %v1004
        %v1006 = vpack.c.bf16 %v977, %v975
        %v1007 = vpack.c.bf16 %v981, %v979
        %v1008 = vpack.c.bf16 %v985, %v983
        %v1009 = vpack.c.bf16 %v989, %v987
        %v1010 = vpack.c.bf16 %v993, %v991
        %v1011 = vpack.c.bf16 %v997, %v995
        %v1012 = vpack.c.bf16 %v1001, %v999
        %v1013 = vpack.c.bf16 %v1005, %v1003
        %1014 = vmatprep.subr.bf16.mxu0 0
        %1015 = vmatpush1.bf16.xpose.msra.mxu0 %v1006
        %1016 = vmatprep.subr.bf16.mxu0 0
        %1017 = vmatpush1.bf16.xpose.msra.mxu0 %v1007
        %1018 = vmatprep.subr.bf16.mxu0 0
        %1019 = vmatpush1.bf16.xpose.msra.mxu0 %v1008
        %1020 = vmatprep.subr.bf16.mxu0 0
        %1021 = vmatpush1.bf16.xpose.msra.mxu0 %v1009
        %1022 = vmatprep.subr.bf16.mxu0 0
        %1023 = vmatpush1.bf16.xpose.msra.mxu0 %v1010
        %1024 = vmatprep.subr.bf16.mxu0 0
        %1025 = vmatpush1.bf16.xpose.msra.mxu0 %v1011
        %1026 = vmatprep.subr.bf16.mxu0 0
        %1027 = vmatpush1.bf16.xpose.msra.mxu0 %v1012
        %1028 = vmatprep.subr.bf16.mxu0 0
        %1029 = vmatpush1.bf16.xpose.msra.mxu0 %v1013
        %1030 = vmatprep.subr.bf16.mxu0 0
        %1031 = vmatpush1.bf16.xpose.msra.mxu0 0
        %1032 = vmatprep.subr.bf16.mxu0 0
        %1033 = vmatpush1.bf16.xpose.msra.mxu0 0
        %1034 = vmatprep.subr.bf16.mxu0 0
        %1035 = vmatpush1.bf16.xpose.msra.mxu0 0
        %1036 = vmatprep.subr.bf16.mxu0 0
        %1037 = vmatpush1.bf16.xpose.msra.mxu0 0
        %1038 = vmatprep.subr.bf16.mxu0 0
        %1039 = vmatpush1.bf16.xpose.msra.mxu0 0
        %1040 = vmatprep.subr.bf16.mxu0 0
        %1041 = vmatpush1.bf16.xpose.msra.mxu0 0
        %1042 = vmatprep.subr.bf16.mxu0 0
        %1043 = vmatpush1.bf16.xpose.msra.mxu0 0
        %1044 = vmatprep.subr.bf16.mxu0 0
        %1045 = vmatpush1.bf16.xpose.msra.mxu0 0
        %1046 = vmatprep.mubr.bf16.mxu0 0
        %1047 = vmatmul.mubr.bf16.gmra.mrb[0].mxu0 %v717
        %v1048 = vpop.f32.mrb[0].mxu0
        %v1049 = vadd.f32 0.0, %v1048
        %v1050 = vpop.f32.mrb[0].mxu0
        %v1051 = vpop.f32.mrb[0].mxu0
        %v1052 = vadd.f32 0.0, %v1051
        %v1053 = vpop.f32.mrb[0].mxu0
        %1054 = vdwg.mxu0
        %v1055 = vrcp.pop %v1052
        %v1056 = vlaneseq
        %v1057 = vshrl.u32 %v1056, 7
        %v1058 = vsub.s32 0, %v1057
        %v1059 = vrot.slane %v1055, %v1058
        %v1060 = vmul.f32 %v1049, %v1059
        %1061 = vst [vmem:[#allocation3] sm:$0xff] %v1060
        %v1062 = vld [vmem:[#allocation3] sm:$0xff]
        %v1063 = vadd.f32 %v587, %v1062
        %v1064 = vld [vmem:[%s5] sm:$0xff]
        %v1065 = vld [vmem:[%s6] sm:$0xff]
        %v1066 = vrot.slane %v1063, 4
        %v1067 = vadd.f32 %v1063, %v1066
        %v1068 = vrot.slane %v1067, 2
        %v1069 = vadd.f32 %v1067, %v1068
        %v1070 = vrot.slane %v1069, 1
        %v1071 = vadd.f32 %v1069, %v1070
        %v1072 = vmul.f32 %v1071, %v555
        %v1073 = vsub.f32 %v1063, %v1072
        %v1074 = vmul.f32 %v1073, %v1073
        %v1075 = vrot.slane %v1074, 4
        %v1076 = vadd.f32 %v1074, %v1075
        %v1077 = vrot.slane %v1076, 2
        %v1078 = vadd.f32 %v1076, %v1077
        %v1079 = vrot.slane %v1078, 1
        %v1080 = vadd.f32 %v1078, %v1079
        %v1081 = vmul.f32 %v1080, 0.14285715
        %v1082 = vrsqrt.pop %v1081
        %v1083 = vmul.f32 %v1081, %v1082
        %vm1084 = vcmp.eq.f32.partialorder %v1081, inf
        %v1085 = vsel %vm1084, %v1081, %v1083
        %vm1086 = vcmp.eq.f32.partialorder %v1081, 0.0
        %v1087 = vand.u32 %v1081, 2147483648
        %v1088 = vsel %vm1086, %v1087, %v1085
        %v1089 = vadd.f32 %v1088, 1e-06
        %v1090 = vrcp.pop %v1089
        %v1091 = vmul.f32 %v1073, %v1090
        %1093 = vset.pattern.permute.xlu0 0
        %1094 = vperm.xlu0 %1093, %v1064
        %v1095 = vpop.permute.xlu0 %1094
        %v1097 = vmul.f32 %v1095, %v1091
        %1099 = vset.pattern.permute.xlu0 0
        %1100 = vperm.xlu0 %1099, %v1065
        %v1101 = vpop.permute.xlu0 %1100
        %v1103 = vadd.f32 %v1097, %v1101
        %v1104 = vld [vmem:[%s11] sm:$0xf]
        %v1105 = vpack.c.bf16 %v1103, %v1103
        %v1106 = vld [vmem:[%s12] sm:$0xff]
        %1108 = vset.pattern.permute.xlu0 0
        %1109 = vperm.xlu0 %1108, %v1106
        %v1110 = vpop.permute.xlu0 %1109
        %v1113 = vsel %vm734, %v1104, 0
        %v1116 = vsel %vm759, %v1105, 0
        %1118 = vmatprep.subr.bf16.mxu0 0
        %1119 = vmatpush1.bf16.msra.mxu0 %v1116
        %1120 = vmatprep.subr.bf16.mxu0 0
        %1121 = vmatpush1.bf16.msra.mxu0 0
        %1122 = vmatprep.subr.bf16.mxu0 0
        %1123 = vmatpush1.bf16.msra.mxu0 0
        %1124 = vmatprep.subr.bf16.mxu0 0
        %1125 = vmatpush1.bf16.msra.mxu0 0
        %1126 = vmatprep.subr.bf16.mxu0 0
        %1127 = vmatpush1.bf16.msra.mxu0 0
        %1128 = vmatprep.subr.bf16.mxu0 0
        %1129 = vmatpush1.bf16.msra.mxu0 0
        %1130 = vmatprep.subr.bf16.mxu0 0
        %1131 = vmatpush1.bf16.msra.mxu0 0
        %1132 = vmatprep.subr.bf16.mxu0 0
        %1133 = vmatpush1.bf16.msra.mxu0 0
        %1134 = vmatprep.subr.bf16.mxu0 0
        %1135 = vmatpush1.bf16.msra.mxu0 0
        %1136 = vmatprep.subr.bf16.mxu0 0
        %1137 = vmatpush1.bf16.msra.mxu0 0
        %1138 = vmatprep.subr.bf16.mxu0 0
        %1139 = vmatpush1.bf16.msra.mxu0 0
        %1140 = vmatprep.subr.bf16.mxu0 0
        %1141 = vmatpush1.bf16.msra.mxu0 0
        %1142 = vmatprep.subr.bf16.mxu0 0
        %1143 = vmatpush1.bf16.msra.mxu0 0
        %1144 = vmatprep.subr.bf16.mxu0 0
        %1145 = vmatpush1.bf16.msra.mxu0 0
        %1146 = vmatprep.subr.bf16.mxu0 0
        %1147 = vmatpush1.bf16.msra.mxu0 0
        %1148 = vmatprep.subr.bf16.mxu0 0
        %1149 = vmatpush1.bf16.msra.mxu0 0
        %1150 = vmatprep.mubr.bf16.mxu0 0
        %1151 = vmatmul.mubr.bf16.gmra.mrb[0].mxu0 %v1113
        %v1152 = vpop.f32.mrb[0].mxu0
        %v1153 = vadd.f32 %v1110, %v1152
        %v1154 = vpop.f32.mrb[0].mxu0
        %v1155 = vpop.f32.mrb[0].mxu0
        %v1156 = vpop.f32.mrb[0].mxu0
        %1157 = vdwg.mxu0
        %v1158 = vmax.f32 %v1153, 0.0
        %v1159 = vld [vmem:[%s13] sm:$0xf]
        %v1160 = vpack.c.bf16 %v1158, %v1158
        %v1161 = vld [vmem:[%s14] sm:$0xff]
        %1163 = vset.pattern.permute.xlu0 0
        %1164 = vperm.xlu0 %1163, %v1161
        %v1165 = vpop.permute.xlu0 %1164
        %v1168 = vsel %vm734, %v1159, 0
        %v1171 = vsel %vm759, %v1160, 0
        %1173 = vmatprep.subr.bf16.mxu0 0
        %1174 = vmatpush1.bf16.msra.mxu0 %v1171
        %1175 = vmatprep.subr.bf16.mxu0 0
        %1176 = vmatpush1.bf16.msra.mxu0 0
        %1177 = vmatprep.subr.bf16.mxu0 0
        %1178 = vmatpush1.bf16.msra.mxu0 0
        %1179 = vmatprep.subr.bf16.mxu0 0
        %1180 = vmatpush1.bf16.msra.mxu0 0
        %1181 = vmatprep.subr.bf16.mxu0 0
        %1182 = vmatpush1.bf16.msra.mxu0 0
        %1183 = vmatprep.subr.bf16.mxu0 0
        %1184 = vmatpush1.bf16.msra.mxu0 0
        %1185 = vmatprep.subr.bf16.mxu0 0
        %1186 = vmatpush1.bf16.msra.mxu0 0
        %1187 = vmatprep.subr.bf16.mxu0 0
        %1188 = vmatpush1.bf16.msra.mxu0 0
        %1189 = vmatprep.subr.bf16.mxu0 0
        %1190 = vmatpush1.bf16.msra.mxu0 0
        %1191 = vmatprep.subr.bf16.mxu0 0
        %1192 = vmatpush1.bf16.msra.mxu0 0
        %1193 = vmatprep.subr.bf16.mxu0 0
        %1194 = vmatpush1.bf16.msra.mxu0 0
        %1195 = vmatprep.subr.bf16.mxu0 0
        %1196 = vmatpush1.bf16.msra.mxu0 0
        %1197 = vmatprep.subr.bf16.mxu0 0
        %1198 = vmatpush1.bf16.msra.mxu0 0
        %1199 = vmatprep.subr.bf16.mxu0 0
        %1200 = vmatpush1.bf16.msra.mxu0 0
        %1201 = vmatprep.subr.bf16.mxu0 0
        %1202 = vmatpush1.bf16.msra.mxu0 0
        %1203 = vmatprep.subr.bf16.mxu0 0
        %1204 = vmatpush1.bf16.msra.mxu0 0
        %1205 = vmatprep.mubr.bf16.mxu0 0
        %1206 = vmatmul.mubr.bf16.gmra.mrb[0].mxu0 %v1168
        %v1207 = vpop.f32.mrb[0].mxu0
        %v1208 = vadd.f32 %v1165, %v1207
        %v1209 = vpop.f32.mrb[0].mxu0
        %v1210 = vpop.f32.mrb[0].mxu0
        %v1211 = vpop.f32.mrb[0].mxu0
        %1212 = vdwg.mxu0
        %v1213 = vadd.f32 %v1063, %v1208
        %v1214 = vld [vmem:[%s7] sm:$0xff]
        %v1215 = vld [vmem:[%s8] sm:$0xff]
        %v1216 = vrot.slane %v1213, 4
        %v1217 = vadd.f32 %v1213, %v1216
        %v1218 = vrot.slane %v1217, 2
        %v1219 = vadd.f32 %v1217, %v1218
        %v1220 = vrot.slane %v1219, 1
        %v1221 = vadd.f32 %v1219, %v1220
        %v1222 = vmul.f32 %v1221, %v555
        %v1223 = vsub.f32 %v1213, %v1222
        %v1224 = vmul.f32 %v1223, %v1223
        %v1225 = vrot.slane %v1224, 4
        %v1226 = vadd.f32 %v1224, %v1225
        %v1227 = vrot.slane %v1226, 2
        %v1228 = vadd.f32 %v1226, %v1227
        %v1229 = vrot.slane %v1228, 1
        %v1230 = vadd.f32 %v1228, %v1229
        %v1231 = vmul.f32 %v1230, 0.14285715
        %v1232 = vrsqrt.pop %v1231
        %v1233 = vmul.f32 %v1231, %v1232
        %vm1234 = vcmp.eq.f32.partialorder %v1231, inf
        %v1235 = vsel %vm1234, %v1231, %v1233
        %vm1236 = vcmp.eq.f32.partialorder %v1231, 0.0
        %v1237 = vand.u32 %v1231, 2147483648
        %v1238 = vsel %vm1236, %v1237, %v1235
        %v1239 = vadd.f32 %v1238, 1e-06
        %v1240 = vrcp.pop %v1239
        %v1241 = vmul.f32 %v1223, %v1240
        %1243 = vset.pattern.permute.xlu0 0
        %1244 = vperm.xlu0 %1243, %v1214
        %v1245 = vpop.permute.xlu0 %1244
        %v1247 = vmul.f32 %v1245, %v1241
        %1249 = vset.pattern.permute.xlu0 0
        %1250 = vperm.xlu0 %1249, %v1215
        %v1251 = vpop.permute.xlu0 %1250
        %v1253 = vadd.f32 %v1247, %v1251
        %1254 = vst [vmem:[%s485] sm:$0xff] %v1253
        %s1255 = sand.u32 %s357, 1
        %s1256 = scalar_lea.sflag [#allocation5], %s1255
        %s1257 = sand.u32 %s357, 1
        %s1258 = smul.addr %s1257, 8
        %s1259 = scalar_lea.vmem [#allocation4], %s1258
        // Predicated region
        $region81: #{tpu_custom_call.1} parent=79 // pred_check
          %p1260 = pneg %p367
        $region82: #{tpu_custom_call.1} parent=79 // pred_check_branch
          %1262 = sbr.rel (%p1260) target = $region84
        $region83: #{tpu_custom_call.1} parent=79 // pred_region
          %s1264 = ssub.s32 128, 128
          %1265 = vsyncadd %s1256, %s1264
          %s1266 = smul.addr %s29, 128
          %s1267 = scalar_lea.hbm %s15, %s1266
          %s1269 = sshll.u32 %s1259, 4
          %s1270 = int_to_ptr.vmem [resolvable:$true] %s1269
          %1272 = dma.vmem_to_hbm [thread:$0]  %s1270, 128, %s1267, %s1256
        $region84: #{tpu_custom_call.1} parent=79 // pred_fallthru
          _
      $region80: #{tpu_custom_call.1} parent=5 // pred_fallthru
        _
      %p1273 = scmp.le.s32.totalorder 2, %s24
      // Predicated region
      $region85: #{tpu_custom_call.1} parent=5 // pred_check
        %p1274 = pneg %p1273
      $region86: #{tpu_custom_call.1} parent=5 // pred_check_branch
        %1276 = sbr.rel (%p1274) target = $region88
      $region87: #{tpu_custom_call.1} parent=5 // pred_region
        %s1277 = ssub.s32 %s24, 2
        // Predicated region
        $region89: #{tpu_custom_call.1} parent=87 // pred_check
          %p1278 = pneg %p373
        $region90: #{tpu_custom_call.1} parent=87 // pred_check_branch
          %1280 = sbr.rel (%p1278) target = $region92
        $region91: #{tpu_custom_call.1} parent=87 // pred_region
          %s1281 = sand.u32 %s358, 1
          %s1282 = scalar_lea.sflag [#allocation5], %s1281
          %s1283 = sand.u32 %s358, 1
          %s1284 = smul.addr %s1283, 8
          %s1285 = scalar_lea.vmem [#allocation4], %s1284
          %1286 = dma.done %s1282, 128
        $region92: #{tpu_custom_call.1} parent=87 // pred_fallthru
          _
      $region88: #{tpu_custom_call.1} parent=5 // pred_fallthru
        _
    $region6: #{tpu_custom_call.1} parent=1 // loop_footer
      %s28 = sadd.s32 1, %s24
    $region7: #{tpu_custom_call.1} parent=1 // loop_footer_branch
      %23 = sbr.rel target = $region3
    $region8: #{tpu_custom_call.1} parent=1 // loop_exit
      _
    %1287 = vsyncpa [#allocation5], 1
    %s1288 = scalar_lea.sflag [#allocation5], 1
    %1289 = vsyncpa %s1288, 1

</llo_original>
